<compile_context>
chip_gen: v7x
topology: tpu7x:2x2x1
jax: 0.10.0
libtpu: 0.0.40
codegen_flags: <defaults>
</compile_context>

<pallas_src>
import functools

import jax
import jax.numpy as jnp
from jax.experimental import pallas as pl
from jax.experimental.pallas import tpu as pltpu


# ----------------------------------------------------------------------------
# Kernel
# ----------------------------------------------------------------------------
def _layernorm(x, gamma, beta, eps=1e-5):
    mu = jnp.mean(x, axis=-1, keepdims=True)
    var = jnp.mean((x - mu) ** 2, axis=-1, keepdims=True)
    return (x - mu) * jax.lax.rsqrt(var + eps) * gamma + beta


def encoder_stack_kernel(n_heads, sk_tile, pt_tile,
                         src_ref, mask_ref,
                         wqkv_ref, bqkv_ref, wo_ref,
                         w1_ref, b1_ref, w2_ref, vec_ref,
                         out_ref, x_carry):
    """Grid = (B // Bt, L).  One grid step = one encoder layer of one batch tile.

    x_carry (VMEM scratch, f32 [Bt, S, H]) carries the activation across the
    layer axis; the output block index is constant across L so it is only
    written on the last layer.
    """
    l = pl.program_id(1)

    @pl.when(l == 0)
    def _():
        x_carry[...] = src_ref[...].astype(jnp.float32)   # fresh batch tile

    Bt, S, H = x_carry.shape
    hd = H // n_heads
    M = Bt * S
    P = w1_ref.shape[-1]
    inv_scale = 1.0 / (float(hd) ** 0.5)                  # python float

    x = x_carry[...].reshape(M, H)                        # [M, H] f32

    mask = mask_ref[...]                                  # [Bt, 1, S] (1 keep, 0 pad)
    bias = (mask - 1.0) * 1e10                            # additive: 0 keep, -1e10 pad

    vec = vec_ref[0]                                      # [6, H]
    bo, ln1_g, ln1_b = vec[0:1], vec[1:2], vec[2:3]
    b2, ln2_g, ln2_b = vec[3:4], vec[4:5], vec[5:6]

    # ---- fused QKV projection (bf16 MXU, f32 accumulation), M = Bt*S rows ----
    qkv = jnp.dot(x.astype(jnp.bfloat16), wqkv_ref[0],
                  preferred_element_type=jnp.float32) + bqkv_ref[0]   # [M, 3H]
    q3 = (qkv[:, :H] * inv_scale).reshape(Bt, S, H).astype(jnp.bfloat16)
    k3 = qkv[:, H:2 * H].reshape(Bt, S, H).astype(jnp.bfloat16)
    v3 = qkv[:, 2 * H:].reshape(Bt, S, H).astype(jnp.bfloat16)

    # ---- multi-head attention: per-head lane slices + key-tiled online softmax.
    # No [*, nh, S, hd] transposes; each head's context feeds the matching K=hd
    # slice of Wo, so no lane concat either.
    attn = jnp.zeros((M, H), jnp.float32)
    for h in range(n_heads):
        c0 = h * hd
        qh = q3[:, :, c0:c0 + hd]                         # [Bt, S, hd]
        kh = k3[:, :, c0:c0 + hd]
        vh = v3[:, :, c0:c0 + hd]
        m_h = jnp.full((Bt, S, 1), -jnp.inf, jnp.float32)
        l_h = jnp.zeros((Bt, S, 1), jnp.float32)
        a_h = jnp.zeros((Bt, S, hd), jnp.float32)
        for k0 in range(0, S, sk_tile):
            kt = min(sk_tile, S - k0)
            s = jnp.einsum("bqd,bkd->bqk", qh, kh[:, k0:k0 + kt, :],
                           preferred_element_type=jnp.float32)        # [Bt, S, kt]
            s = s + bias[:, :, k0:k0 + kt]
            m_new = jnp.maximum(m_h, jnp.max(s, axis=-1, keepdims=True))
            alpha = jnp.exp(m_h - m_new)
            p = jnp.exp(s - m_new)
            l_h = alpha * l_h + jnp.sum(p, axis=-1, keepdims=True)
            a_h = alpha * a_h + jnp.einsum("bqk,bkd->bqd",
                                           p.astype(jnp.bfloat16),
                                           vh[:, k0:k0 + kt, :],
                                           preferred_element_type=jnp.float32)
            m_h = m_new
        # NOTE: approx reciprocal (EUP) -> ~1e-3 relative error in the softmax
        # weights; use approx=False if bit-level parity with PyTorch matters.
        ctx_h = (a_h * pl.reciprocal(l_h, approx=True)).reshape(M, hd)
        attn = attn + jnp.dot(ctx_h.astype(jnp.bfloat16),
                              wo_ref[0, c0:c0 + hd, :],
                              preferred_element_type=jnp.float32)
    attn = attn + bo

    # residual + layernorm (dropout == identity in eval mode)
    x1 = _layernorm(x + attn, ln1_g, ln1_b)

    # ---- position-wise feed-forward, tiled over the pff (P) dimension --------
    x1_bf = x1.astype(jnp.bfloat16)
    ff = jnp.zeros((M, H), jnp.float32)
    for p0 in range(0, P, pt_tile):
        pt = min(pt_tile, P - p0)
        h1 = jnp.dot(x1_bf, w1_ref[0, :, p0:p0 + pt],
                     preferred_element_type=jnp.float32) + b1_ref[0, :, p0:p0 + pt]
        h1 = jnp.maximum(h1, 0.0)
        ff = ff + jnp.dot(h1.astype(jnp.bfloat16), w2_ref[0, p0:p0 + pt, :],
                          preferred_element_type=jnp.float32)
    ff = ff + b2

    x2 = _layernorm(x1 + ff, ln2_g, ln2_b)
    x_carry[...] = x2.reshape(Bt, S, H)

    @pl.when(l == pl.num_programs(1) - 1)
    def _():
        out_ref[...] = x2.reshape(Bt, S, H)


# ----------------------------------------------------------------------------
# Tile / VMEM budgeting (generation aware)
# ----------------------------------------------------------------------------
def _select_tiles(B, S, H, P, n_heads):
    try:
        vmem_cap = int(pltpu.get_tpu_info().vmem_capacity_bytes)
    except Exception:
        vmem_cap = 64 << 20                       # most restrictive gen (v7x per-TC)

    sk_tile = min(S, 512)                         # key tile for online softmax
    pt_tile = min(P, 1024)                        # pff chunk
    hd = H // n_heads

    def estimate(bt):
        m = bt * S
        wgt = 2 * 2 * (H * 3 * H + H * H + 2 * H * P)      # bf16 weights, double-buffered
        small = 2 * 4 * (3 * H + P + 6 * H)                # f32 biases / LN packs, dbl-buf
        io = 2 * (m * H * 2 + bt * S * 4 + m * H * 4)      # src(bf16)+mask+out(f32), dbl-buf
        carry = m * H * 4                                  # layer-to-layer scratch
        act = m * (3 * H * 4 + 3 * H * 2                   # qkv f32 + bf16 q/k/v
                   + 6 * H * 4 + 2 * H * 2                 # x/attn/x1/ff/x2 f32 + bf16 copies
                   + pt_tile * 6)                          # FFN chunk f32 + bf16
        attn_tmp = bt * S * (sk_tile * 10 + hd * 6 + 8)    # one head's live score tile + acc
        return wgt + small + io + carry + act + attn_tmp

    budget = int(0.70 * vmem_cap)
    bt = 1
    for cand in range(B, 0, -1):                  # largest divisor of B that fits
        if B % cand == 0 and estimate(cand) <= budget:
            bt = cand
            break
    # Keep >=2 steps on the "parallel" batch axis (megacore sharding) once the
    # flattened M = Bt*S already fills the MXU rows.
    if B // bt == 1 and bt % 2 == 0 and (bt // 2) * S >= 256:
        bt //= 2

    vmem_limit = int(min(estimate(bt) * 1.25 + (8 << 20), 0.85 * vmem_cap))
    vmem_limit = max(vmem_limit, 16 << 20)
    return bt, sk_tile, pt_tile, vmem_limit


# ----------------------------------------------------------------------------
# Wrappers
# ----------------------------------------------------------------------------
def run_encoder_stack(x, mask, params, n_heads):
    B, S, H = x.shape
    L = params["wqkv"].shape[0]
    P = params["w1"].shape[-1]
    bt, sk_tile, pt_tile, vmem_limit = _select_tiles(B, S, H, P, n_heads)

    def wspec(d0, d1):
        # Per-layer weight/bias blocks, indexed by the layer grid axis.
        return pl.BlockSpec((1, d0, d1), lambda b, l: (l, 0, 0))

    in_specs = [
        pl.BlockSpec((bt, S, H), lambda b, l: (b, 0, 0)),   # embeddings (bf16)
        pl.BlockSpec((bt, 1, S), lambda b, l: (b, 0, 0)),   # mask
        wspec(H, 3 * H),                                    # wqkv (bf16)
        wspec(1, 3 * H),                                    # bqkv
        wspec(H, H),                                        # wo   (bf16)
        wspec(H, P),                                        # w1   (bf16)
        wspec(1, P),                                        # b1
        wspec(P, H),                                        # w2   (bf16)
        wspec(6, H),                                        # bo, ln1_g, ln1_b, b2, ln2_g, ln2_b
    ]

    return pl.pallas_call(
        functools.partial(encoder_stack_kernel, n_heads, sk_tile, pt_tile),
        out_shape=jax.ShapeDtypeStruct((B, S, H), jnp.float32),
        grid=(B // bt, L),
        in_specs=in_specs,
        out_specs=pl.BlockSpec((bt, S, H), lambda b, l: (b, 0, 0)),
        scratch_shapes=[pltpu.VMEM((bt, S, H), jnp.float32)],   # layer-to-layer carry
        compiler_params=pltpu.CompilerParams(
            dimension_semantics=("parallel", "arbitrary"),
            vmem_limit_bytes=vmem_limit),
    )(x, mask,
      params["wqkv"], params["bqkv"], params["wo"],
      params["w1"], params["b1"], params["w2"], params["vecH"])


def encoder_forward(src_tokens, src_mask, params, n_heads):
    """src_tokens: [B, S] int32; src_mask: [B, 1, S] float32; returns [B, S, H] f32."""
    B, S = src_tokens.shape
    H = params["tok_table"].shape[1]
    scale = float(H) ** 0.5

    # Embedding gathers + scaled combine are plain-JAX glue (memory bound, XLA
    # fuses them); dropout is identity in eval mode.  Fed to the kernel in bf16.
    tok_emb = jnp.take(params["tok_table"], src_tokens, axis=0)   # [B, S, H]
    pos_emb = params["pos_table"][:S]                             # [S, H]
    x = (tok_emb * scale + pos_emb[None, :, :]).astype(jnp.bfloat16)

    return run_encoder_stack(x, src_mask, params, n_heads)


# ----------------------------------------------------------------------------
# Deterministic parameter init + demo
# ----------------------------------------------------------------------------
def init_params(key, input_dim, hid_dim, n_layers, pf_dim, max_length):
    H, P, L = hid_dim, pf_dim, n_layers
    keys = jax.random.split(key, 2 + 6 * L)

    tok_table = 0.02 * jax.random.normal(keys[0], (input_dim, H), jnp.float32)
    pos_table = 0.02 * jax.random.normal(keys[1], (max_length, H), jnp.float32)

    wqkv, wo, w1, w2 = [], [], [], []
    for i in range(L):
        kq, kk, kv, ko, k1, k2 = keys[2 + 6 * i: 2 + 6 * (i + 1)]
        wqkv.append(jnp.concatenate([
            0.05 * jax.random.normal(kq, (H, H), jnp.float32),
            0.05 * jax.random.normal(kk, (H, H), jnp.float32),
            0.05 * jax.random.normal(kv, (H, H), jnp.float32)], axis=1))
        wo.append(0.05 * jax.random.normal(ko, (H, H), jnp.float32))
        w1.append(0.05 * jax.random.normal(k1, (H, P), jnp.float32))
        w2.append(0.05 * jax.random.normal(k2, (P, H), jnp.float32))

    # Packed small per-layer vectors: rows = bo, ln1_g, ln1_b, b2, ln2_g, ln2_b.
    vec1 = jnp.stack([jnp.zeros(H), jnp.ones(H), jnp.zeros(H),
                      jnp.zeros(H), jnp.ones(H), jnp.zeros(H)]).astype(jnp.float32)
    vecH = jnp.tile(vec1[None], (L, 1, 1))                       # [L, 6, H]

    return {
        "tok_table": tok_table,
        "pos_table": pos_table,
        "wqkv": jnp.stack(wqkv).astype(jnp.bfloat16),            # [L, H, 3H]
        "bqkv": jnp.zeros((L, 1, 3 * H), jnp.float32),
        "wo": jnp.stack(wo).astype(jnp.bfloat16),                # [L, H, H]
        "w1": jnp.stack(w1).astype(jnp.bfloat16),                # [L, H, P]
        "b1": jnp.zeros((L, 1, P), jnp.float32),
        "w2": jnp.stack(w2).astype(jnp.bfloat16),                # [L, P, H]
        "vecH": vecH,                                            # [L, 6, H]
    }


if __name__ == "__main__":
    B, S = 2, 8
    INPUT_DIM, HID_DIM, N_LAYERS, N_HEADS, PF_DIM = 50, 32, 2, 4, 64
    MAX_LEN = 100

    key = jax.random.PRNGKey(0)
    k_tok, k_par = jax.random.split(key)

    src_tokens = jax.random.randint(k_tok, (B, S), 0, INPUT_DIM, dtype=jnp.int32)
    # src_mask: 1.0 = attend, 0.0 = padded (pad out last two positions of batch 1)
    src_mask = jnp.ones((B, 1, S), jnp.float32)
    src_mask = src_mask.at[1, 0, -2:].set(0.0)

    params = init_params(k_par, INPUT_DIM, HID_DIM, N_LAYERS, PF_DIM, MAX_LEN)

    out = encoder_forward(src_tokens, src_mask, params, N_HEADS)
    out = jax.block_until_ready(out)
    assert out.shape == (B, S, HID_DIM)
    assert bool(jnp.all(jnp.isfinite(out)))
    print("KERNEL_OK")
</pallas_src>

<mosaic_0001>
module attributes {stable_mosaic.version = 11 : i64} {
  func.func @encoder_stack_kernel(%arg0: i32, %arg1: i32, %arg2: memref<2x8x32xbf16, #tpu.memory_space<vmem>>, %arg3: memref<2x1x8xf32, #tpu.memory_space<vmem>>, %arg4: memref<1x32x96xbf16, #tpu.memory_space<vmem>>, %arg5: memref<1x1x96xf32, #tpu.memory_space<vmem>>, %arg6: memref<1x32x32xbf16, #tpu.memory_space<vmem>>, %arg7: memref<1x32x64xbf16, #tpu.memory_space<vmem>>, %arg8: memref<1x1x64xf32, #tpu.memory_space<vmem>>, %arg9: memref<1x64x32xbf16, #tpu.memory_space<vmem>>, %arg10: memref<1x6x32xf32, #tpu.memory_space<vmem>>, %arg11: memref<2x8x32xf32, #tpu.memory_space<vmem>>, %arg12: memref<2x8x32xf32, #tpu.memory_space<vmem>>) attributes {dimension_semantics = [#tpu.dimension_semantics<parallel>, #tpu.dimension_semantics<arbitrary>], iteration_bounds = array<i64: 1, 2>, scalar_prefetch = 0 : i64, scratch_operands = 1 : i64, tpu.core_type = #tpu.core_type<tc>, window_params = [{transform_indices = @transform_0, window_bounds = array<i64: 2, 8, 32>}, {transform_indices = @transform_1, window_bounds = array<i64: 2, 1, 8>}, {transform_indices = @transform_2, window_bounds = array<i64: 1, 32, 96>}, {transform_indices = @transform_3, window_bounds = array<i64: 1, 1, 96>}, {transform_indices = @transform_4, window_bounds = array<i64: 1, 32, 32>}, {transform_indices = @transform_5, window_bounds = array<i64: 1, 32, 64>}, {transform_indices = @transform_6, window_bounds = array<i64: 1, 1, 64>}, {transform_indices = @transform_7, window_bounds = array<i64: 1, 64, 32>}, {transform_indices = @transform_8, window_bounds = array<i64: 1, 6, 32>}, {transform_indices = @transform_9, window_bounds = array<i64: 2, 8, 32>}]} {
    %c0_i32 = arith.constant 0 : i32
    %0 = arith.cmpi eq, %arg1, %c0_i32 : i32
    %1 = arith.extui %0 : i1 to i32
    %c0_i32_0 = arith.constant 0 : i32
    %2 = arith.cmpi ne, %1, %c0_i32_0 : i32
    scf.if %2 {
      %c0_87 = arith.constant 0 : index
      %c0_88 = arith.constant 0 : index
      %c0_89 = arith.constant 0 : index
      %249 = vector.load %arg2[%c0_87, %c0_88, %c0_89] : memref<2x8x32xbf16, #tpu.memory_space<vmem>>, vector<2x8x32xbf16>
      %250 = arith.extf %249 : vector<2x8x32xbf16> to vector<2x8x32xf32>
      %c0_90 = arith.constant 0 : index
      %c0_91 = arith.constant 0 : index
      %c0_92 = arith.constant 0 : index
      %251 = vector.load %arg12[%c0_90, %c0_91, %c0_92] : memref<2x8x32xf32, #tpu.memory_space<vmem>>, vector<2x8x32xf32>
      tpu.vector_store %arg12[%c0_90, %c0_91, %c0_92], %250 {strides = array<i32>} : memref<2x8x32xf32, #tpu.memory_space<vmem>>, vector<2x8x32xf32>,
    } else {
    }
    %c0 = arith.constant 0 : index
    %c0_1 = arith.constant 0 : index
    %c0_2 = arith.constant 0 : index
    %3 = vector.load %arg12[%c0, %c0_1, %c0_2] : memref<2x8x32xf32, #tpu.memory_space<vmem>>, vector<2x8x32xf32>
    %4 = vector.shape_cast %3 : vector<2x8x32xf32> to vector<16x32xf32>
    %c0_3 = arith.constant 0 : index
    %c0_4 = arith.constant 0 : index
    %c0_5 = arith.constant 0 : index
    %5 = vector.load %arg3[%c0_3, %c0_4, %c0_5] : memref<2x1x8xf32, #tpu.memory_space<vmem>>, vector<2x1x8xf32>
    %cst = arith.constant 1.000000e+00 : f32
    %6 = vector.broadcast %cst : f32 to vector<2x1x8xf32>
    %7 = arith.subf %5, %6 : vector<2x1x8xf32>
    %cst_6 = arith.constant 1.000000e+10 : f32
    %8 = vector.broadcast %cst_6 : f32 to vector<2x1x8xf32>
    %9 = arith.mulf %7, %8 : vector<2x1x8xf32>
    %c0_7 = arith.constant 0 : index
    %c0_8 = arith.constant 0 : index
    %c0_9 = arith.constant 0 : index
    %10 = vector.load %arg10[%c0_7, %c0_8, %c0_9] : memref<1x6x32xf32, #tpu.memory_space<vmem>>, vector<1x6x32xf32>
    %11 = vector.shape_cast %10 : vector<1x6x32xf32> to vector<6x32xf32>
    %12 = vector.extract_strided_slice %11 {offsets = [0, 0], sizes = [1, 32], strides = [1, 1]} : vector<6x32xf32> to vector<1x32xf32>
    %13 = vector.extract_strided_slice %11 {offsets = [1, 0], sizes = [1, 32], strides = [1, 1]} : vector<6x32xf32> to vector<1x32xf32>
    %14 = vector.extract_strided_slice %11 {offsets = [2, 0], sizes = [1, 32], strides = [1, 1]} : vector<6x32xf32> to vector<1x32xf32>
    %15 = vector.extract_strided_slice %11 {offsets = [3, 0], sizes = [1, 32], strides = [1, 1]} : vector<6x32xf32> to vector<1x32xf32>
    %16 = vector.extract_strided_slice %11 {offsets = [4, 0], sizes = [1, 32], strides = [1, 1]} : vector<6x32xf32> to vector<1x32xf32>
    %17 = vector.extract_strided_slice %11 {offsets = [5, 0], sizes = [1, 32], strides = [1, 1]} : vector<6x32xf32> to vector<1x32xf32>
    %18 = arith.truncf %4 : vector<16x32xf32> to vector<16x32xbf16>
    %c0_10 = arith.constant 0 : index
    %c0_11 = arith.constant 0 : index
    %c0_12 = arith.constant 0 : index
    %19 = vector.load %arg4[%c0_10, %c0_11, %c0_12] : memref<1x32x96xbf16, #tpu.memory_space<vmem>>, vector<1x32x96xbf16>
    %20 = vector.shape_cast %19 : vector<1x32x96xbf16> to vector<32x96xbf16>
    %cst_13 = arith.constant dense<0.000000e+00> : vector<16x96xf32>
    %21 = tpu.matmul %18, %20, %cst_13 {dimension_numbers = #tpu.dot_dimension_numbers<[1], [0], [0], [1], [0, 0, 1, 1], [], []>} : vector<16x32xbf16>, vector<32x96xbf16>, vector<16x96xf32> -> vector<16x96xf32>
    %c0_14 = arith.constant 0 : index
    %c0_15 = arith.constant 0 : index
    %c0_16 = arith.constant 0 : index
    %22 = vector.load %arg5[%c0_14, %c0_15, %c0_16] : memref<1x1x96xf32, #tpu.memory_space<vmem>>, vector<1x1x96xf32>
    %23 = vector.shape_cast %22 : vector<1x1x96xf32> to vector<1x96xf32>
    %24 = vector.broadcast %23 : vector<1x96xf32> to vector<16x96xf32>
    %25 = arith.addf %21, %24 : vector<16x96xf32>
    %26 = vector.extract_strided_slice %25 {offsets = [0, 0], sizes = [16, 32], strides = [1, 1]} : vector<16x96xf32> to vector<16x32xf32>
    %cst_17 = arith.constant 0.353553385 : f32
    %27 = vector.broadcast %cst_17 : f32 to vector<16x32xf32>
    %28 = arith.mulf %26, %27 : vector<16x32xf32>
    %29 = vector.shape_cast %28 : vector<16x32xf32> to vector<2x8x32xf32>
    %30 = arith.truncf %29 : vector<2x8x32xf32> to vector<2x8x32xbf16>
    %31 = vector.extract_strided_slice %25 {offsets = [0, 32], sizes = [16, 32], strides = [1, 1]} : vector<16x96xf32> to vector<16x32xf32>
    %32 = vector.shape_cast %31 : vector<16x32xf32> to vector<2x8x32xf32>
    %33 = arith.truncf %32 : vector<2x8x32xf32> to vector<2x8x32xbf16>
    %34 = vector.extract_strided_slice %25 {offsets = [0, 64], sizes = [16, 32], strides = [1, 1]} : vector<16x96xf32> to vector<16x32xf32>
    %35 = vector.shape_cast %34 : vector<16x32xf32> to vector<2x8x32xf32>
    %36 = arith.truncf %35 : vector<2x8x32xf32> to vector<2x8x32xbf16>
    %cst_18 = arith.constant 0.000000e+00 : f32
    %37 = vector.broadcast %cst_18 : f32 to vector<16x32xf32>
    %38 = vector.extract_strided_slice %30 {offsets = [0, 0, 0], sizes = [2, 8, 8], strides = [1, 1, 1]} : vector<2x8x32xbf16> to vector<2x8x8xbf16>
    %39 = vector.extract_strided_slice %33 {offsets = [0, 0, 0], sizes = [2, 8, 8], strides = [1, 1, 1]} : vector<2x8x32xbf16> to vector<2x8x8xbf16>
    %40 = vector.extract_strided_slice %36 {offsets = [0, 0, 0], sizes = [2, 8, 8], strides = [1, 1, 1]} : vector<2x8x32xbf16> to vector<2x8x8xbf16>
    %cst_19 = arith.constant 0xFF800000 : f32
    %41 = vector.broadcast %cst_19 : f32 to vector<2x8x1xf32>
    %cst_20 = arith.constant 0.000000e+00 : f32
    %42 = vector.broadcast %cst_20 : f32 to vector<2x8x1xf32>
    %cst_21 = arith.constant 0.000000e+00 : f32
    %43 = vector.broadcast %cst_21 : f32 to vector<2x8x8xf32>
    "tpu.trace_start"() <{level = 10 : i32, message = "bqd,bkd->bqk"}> : () -> ()
    %cst_22 = arith.constant dense<0.000000e+00> : vector<2x8x8xf32>
    %44 = tpu.matmul %38, %39, %cst_22 {dimension_numbers = #tpu.dot_dimension_numbers<[2], [2], [1], [1], [0, 0, 0, 1, 1, 1], [0], [0]>} : vector<2x8x8xbf16>, vector<2x8x8xbf16>, vector<2x8x8xf32> -> vector<2x8x8xf32>
    "tpu.trace_stop"() : () -> ()
    %45 = vector.broadcast %9 : vector<2x1x8xf32> to vector<2x8x8xf32>
    %46 = arith.addf %44, %45 : vector<2x8x8xf32>
    %cst_23 = arith.constant dense<0xFF800000> : vector<2x8xf32>
    %47 = vector.multi_reduction <maximumf>, %46, %cst_23 [2] : vector<2x8x8xf32> to vector<2x8xf32>
    %48 = vector.shape_cast %47 : vector<2x8xf32> to vector<2x8x1xf32>
    %49 = arith.maximumf %41, %48 : vector<2x8x1xf32>
    %50 = arith.subf %41, %49 : vector<2x8x1xf32>
    %51 = math.exp %50 : vector<2x8x1xf32>
    %52 = vector.broadcast %49 : vector<2x8x1xf32> to vector<2x8x8xf32>
    %53 = arith.subf %46, %52 : vector<2x8x8xf32>
    %54 = math.exp %53 : vector<2x8x8xf32>
    %55 = arith.mulf %51, %42 : vector<2x8x1xf32>
    %cst_24 = arith.constant dense<0.000000e+00> : vector<2x8xf32>
    %56 = vector.multi_reduction <add>, %54, %cst_24 [2] : vector<2x8x8xf32> to vector<2x8xf32>
    %57 = vector.shape_cast %56 : vector<2x8xf32> to vector<2x8x1xf32>
    %58 = arith.addf %55, %57 : vector<2x8x1xf32>
    %59 = vector.broadcast %51 : vector<2x8x1xf32> to vector<2x8x8xf32>
    %60 = arith.mulf %59, %43 : vector<2x8x8xf32>
    %61 = arith.truncf %54 : vector<2x8x8xf32> to vector<2x8x8xbf16>
    "tpu.trace_start"() <{level = 10 : i32, message = "bqk,bkd->bqd"}> : () -> ()
    %cst_25 = arith.constant dense<0.000000e+00> : vector<2x8x8xf32>
    %62 = tpu.matmul %61, %40, %cst_25 {dimension_numbers = #tpu.dot_dimension_numbers<[2], [1], [1], [2], [0, 0, 0, 1, 1, 2], [0], [0]>} : vector<2x8x8xbf16>, vector<2x8x8xbf16>, vector<2x8x8xf32> -> vector<2x8x8xf32>
    "tpu.trace_stop"() : () -> ()
    %63 = arith.addf %60, %62 : vector<2x8x8xf32>
    %64 = tpu.reciprocal %58 {approx = true} : vector<2x8x1xf32> -> vector<2x8x1xf32>
    %65 = vector.broadcast %64 : vector<2x8x1xf32> to vector<2x8x8xf32>
    %66 = arith.mulf %63, %65 : vector<2x8x8xf32>
    %67 = vector.shape_cast %66 : vector<2x8x8xf32> to vector<16x8xf32>
    %68 = arith.truncf %67 : vector<16x8xf32> to vector<16x8xbf16>
    %c0_26 = arith.constant 0 : index
    %c0_27 = arith.constant 0 : index
    %c0_28 = arith.constant 0 : index
    %69 = vector.load %arg6[%c0_26, %c0_27, %c0_28] : memref<1x32x32xbf16, #tpu.memory_space<vmem>>, vector<1x8x32xbf16>
    %70 = vector.shape_cast %69 : vector<1x8x32xbf16> to vector<8x32xbf16>
    %cst_29 = arith.constant dense<0.000000e+00> : vector<16x32xf32>
    %71 = tpu.matmul %68, %70, %cst_29 {dimension_numbers = #tpu.dot_dimension_numbers<[1], [0], [0], [1], [0, 0, 1, 1], [], []>} : vector<16x8xbf16>, vector<8x32xbf16>, vector<16x32xf32> -> vector<16x32xf32>
    %72 = arith.addf %37, %71 : vector<16x32xf32>
    %73 = vector.extract_strided_slice %30 {offsets = [0, 0, 8], sizes = [2, 8, 8], strides = [1, 1, 1]} : vector<2x8x32xbf16> to vector<2x8x8xbf16>
    %74 = vector.extract_strided_slice %33 {offsets = [0, 0, 8], sizes = [2, 8, 8], strides = [1, 1, 1]} : vector<2x8x32xbf16> to vector<2x8x8xbf16>
    %75 = vector.extract_strided_slice %36 {offsets = [0, 0, 8], sizes = [2, 8, 8], strides = [1, 1, 1]} : vector<2x8x32xbf16> to vector<2x8x8xbf16>
    %cst_30 = arith.constant 0xFF800000 : f32
    %76 = vector.broadcast %cst_30 : f32 to vector<2x8x1xf32>
    %cst_31 = arith.constant 0.000000e+00 : f32
    %77 = vector.broadcast %cst_31 : f32 to vector<2x8x1xf32>
    %cst_32 = arith.constant 0.000000e+00 : f32
    %78 = vector.broadcast %cst_32 : f32 to vector<2x8x8xf32>
    "tpu.trace_start"() <{level = 10 : i32, message = "bqd,bkd->bqk"}> : () -> ()
    %cst_33 = arith.constant dense<0.000000e+00> : vector<2x8x8xf32>
    %79 = tpu.matmul %73, %74, %cst_33 {dimension_numbers = #tpu.dot_dimension_numbers<[2], [2], [1], [1], [0, 0, 0, 1, 1, 1], [0], [0]>} : vector<2x8x8xbf16>, vector<2x8x8xbf16>, vector<2x8x8xf32> -> vector<2x8x8xf32>
    "tpu.trace_stop"() : () -> ()
    %80 = vector.broadcast %9 : vector<2x1x8xf32> to vector<2x8x8xf32>
    %81 = arith.addf %79, %80 : vector<2x8x8xf32>
    %cst_34 = arith.constant dense<0xFF800000> : vector<2x8xf32>
    %82 = vector.multi_reduction <maximumf>, %81, %cst_34 [2] : vector<2x8x8xf32> to vector<2x8xf32>
    %83 = vector.shape_cast %82 : vector<2x8xf32> to vector<2x8x1xf32>
    %84 = arith.maximumf %76, %83 : vector<2x8x1xf32>
    %85 = arith.subf %76, %84 : vector<2x8x1xf32>
    %86 = math.exp %85 : vector<2x8x1xf32>
    %87 = vector.broadcast %84 : vector<2x8x1xf32> to vector<2x8x8xf32>
    %88 = arith.subf %81, %87 : vector<2x8x8xf32>
    %89 = math.exp %88 : vector<2x8x8xf32>
    %90 = arith.mulf %86, %77 : vector<2x8x1xf32>
    %cst_35 = arith.constant dense<0.000000e+00> : vector<2x8xf32>
    %91 = vector.multi_reduction <add>, %89, %cst_35 [2] : vector<2x8x8xf32> to vector<2x8xf32>
    %92 = vector.shape_cast %91 : vector<2x8xf32> to vector<2x8x1xf32>
    %93 = arith.addf %90, %92 : vector<2x8x1xf32>
    %94 = vector.broadcast %86 : vector<2x8x1xf32> to vector<2x8x8xf32>
    %95 = arith.mulf %94, %78 : vector<2x8x8xf32>
    %96 = arith.truncf %89 : vector<2x8x8xf32> to vector<2x8x8xbf16>
    "tpu.trace_start"() <{level = 10 : i32, message = "bqk,bkd->bqd"}> : () -> ()
    %cst_36 = arith.constant dense<0.000000e+00> : vector<2x8x8xf32>
    %97 = tpu.matmul %96, %75, %cst_36 {dimension_numbers = #tpu.dot_dimension_numbers<[2], [1], [1], [2], [0, 0, 0, 1, 1, 2], [0], [0]>} : vector<2x8x8xbf16>, vector<2x8x8xbf16>, vector<2x8x8xf32> -> vector<2x8x8xf32>
    "tpu.trace_stop"() : () -> ()
    %98 = arith.addf %95, %97 : vector<2x8x8xf32>
    %99 = tpu.reciprocal %93 {approx = true} : vector<2x8x1xf32> -> vector<2x8x1xf32>
    %100 = vector.broadcast %99 : vector<2x8x1xf32> to vector<2x8x8xf32>
    %101 = arith.mulf %98, %100 : vector<2x8x8xf32>
    %102 = vector.shape_cast %101 : vector<2x8x8xf32> to vector<16x8xf32>
    %103 = arith.truncf %102 : vector<16x8xf32> to vector<16x8xbf16>
    %c0_37 = arith.constant 0 : index
    %c8 = arith.constant 8 : index
    %c0_38 = arith.constant 0 : index
    %104 = vector.load %arg6[%c0_37, %c8, %c0_38] : memref<1x32x32xbf16, #tpu.memory_space<vmem>>, vector<1x8x32xbf16>
    %105 = vector.shape_cast %104 : vector<1x8x32xbf16> to vector<8x32xbf16>
    %cst_39 = arith.constant dense<0.000000e+00> : vector<16x32xf32>
    %106 = tpu.matmul %103, %105, %cst_39 {dimension_numbers = #tpu.dot_dimension_numbers<[1], [0], [0], [1], [0, 0, 1, 1], [], []>} : vector<16x8xbf16>, vector<8x32xbf16>, vector<16x32xf32> -> vector<16x32xf32>
    %107 = arith.addf %72, %106 : vector<16x32xf32>
    %108 = vector.extract_strided_slice %30 {offsets = [0, 0, 16], sizes = [2, 8, 8], strides = [1, 1, 1]} : vector<2x8x32xbf16> to vector<2x8x8xbf16>
    %109 = vector.extract_strided_slice %33 {offsets = [0, 0, 16], sizes = [2, 8, 8], strides = [1, 1, 1]} : vector<2x8x32xbf16> to vector<2x8x8xbf16>
    %110 = vector.extract_strided_slice %36 {offsets = [0, 0, 16], sizes = [2, 8, 8], strides = [1, 1, 1]} : vector<2x8x32xbf16> to vector<2x8x8xbf16>
    %cst_40 = arith.constant 0xFF800000 : f32
    %111 = vector.broadcast %cst_40 : f32 to vector<2x8x1xf32>
    %cst_41 = arith.constant 0.000000e+00 : f32
    %112 = vector.broadcast %cst_41 : f32 to vector<2x8x1xf32>
    %cst_42 = arith.constant 0.000000e+00 : f32
    %113 = vector.broadcast %cst_42 : f32 to vector<2x8x8xf32>
    "tpu.trace_start"() <{level = 10 : i32, message = "bqd,bkd->bqk"}> : () -> ()
    %cst_43 = arith.constant dense<0.000000e+00> : vector<2x8x8xf32>
    %114 = tpu.matmul %108, %109, %cst_43 {dimension_numbers = #tpu.dot_dimension_numbers<[2], [2], [1], [1], [0, 0, 0, 1, 1, 1], [0], [0]>} : vector<2x8x8xbf16>, vector<2x8x8xbf16>, vector<2x8x8xf32> -> vector<2x8x8xf32>
    "tpu.trace_stop"() : () -> ()
    %115 = vector.broadcast %9 : vector<2x1x8xf32> to vector<2x8x8xf32>
    %116 = arith.addf %114, %115 : vector<2x8x8xf32>
    %cst_44 = arith.constant dense<0xFF800000> : vector<2x8xf32>
    %117 = vector.multi_reduction <maximumf>, %116, %cst_44 [2] : vector<2x8x8xf32> to vector<2x8xf32>
    %118 = vector.shape_cast %117 : vector<2x8xf32> to vector<2x8x1xf32>
    %119 = arith.maximumf %111, %118 : vector<2x8x1xf32>
    %120 = arith.subf %111, %119 : vector<2x8x1xf32>
    %121 = math.exp %120 : vector<2x8x1xf32>
    %122 = vector.broadcast %119 : vector<2x8x1xf32> to vector<2x8x8xf32>
    %123 = arith.subf %116, %122 : vector<2x8x8xf32>
    %124 = math.exp %123 : vector<2x8x8xf32>
    %125 = arith.mulf %121, %112 : vector<2x8x1xf32>
    %cst_45 = arith.constant dense<0.000000e+00> : vector<2x8xf32>
    %126 = vector.multi_reduction <add>, %124, %cst_45 [2] : vector<2x8x8xf32> to vector<2x8xf32>
    %127 = vector.shape_cast %126 : vector<2x8xf32> to vector<2x8x1xf32>
    %128 = arith.addf %125, %127 : vector<2x8x1xf32>
    %129 = vector.broadcast %121 : vector<2x8x1xf32> to vector<2x8x8xf32>
    %130 = arith.mulf %129, %113 : vector<2x8x8xf32>
    %131 = arith.truncf %124 : vector<2x8x8xf32> to vector<2x8x8xbf16>
    "tpu.trace_start"() <{level = 10 : i32, message = "bqk,bkd->bqd"}> : () -> ()
    %cst_46 = arith.constant dense<0.000000e+00> : vector<2x8x8xf32>
    %132 = tpu.matmul %131, %110, %cst_46 {dimension_numbers = #tpu.dot_dimension_numbers<[2], [1], [1], [2], [0, 0, 0, 1, 1, 2], [0], [0]>} : vector<2x8x8xbf16>, vector<2x8x8xbf16>, vector<2x8x8xf32> -> vector<2x8x8xf32>
    "tpu.trace_stop"() : () -> ()
    %133 = arith.addf %130, %132 : vector<2x8x8xf32>
    %134 = tpu.reciprocal %128 {approx = true} : vector<2x8x1xf32> -> vector<2x8x1xf32>
    %135 = vector.broadcast %134 : vector<2x8x1xf32> to vector<2x8x8xf32>
    %136 = arith.mulf %133, %135 : vector<2x8x8xf32>
    %137 = vector.shape_cast %136 : vector<2x8x8xf32> to vector<16x8xf32>
    %138 = arith.truncf %137 : vector<16x8xf32> to vector<16x8xbf16>
    %c0_47 = arith.constant 0 : index
    %c16 = arith.constant 16 : index
    %c0_48 = arith.constant 0 : index
    %139 = vector.load %arg6[%c0_47, %c16, %c0_48] : memref<1x32x32xbf16, #tpu.memory_space<vmem>>, vector<1x8x32xbf16>
    %140 = vector.shape_cast %139 : vector<1x8x32xbf16> to vector<8x32xbf16>
    %cst_49 = arith.constant dense<0.000000e+00> : vector<16x32xf32>
    %141 = tpu.matmul %138, %140, %cst_49 {dimension_numbers = #tpu.dot_dimension_numbers<[1], [0], [0], [1], [0, 0, 1, 1], [], []>} : vector<16x8xbf16>, vector<8x32xbf16>, vector<16x32xf32> -> vector<16x32xf32>
    %142 = arith.addf %107, %141 : vector<16x32xf32>
    %143 = vector.extract_strided_slice %30 {offsets = [0, 0, 24], sizes = [2, 8, 8], strides = [1, 1, 1]} : vector<2x8x32xbf16> to vector<2x8x8xbf16>
    %144 = vector.extract_strided_slice %33 {offsets = [0, 0, 24], sizes = [2, 8, 8], strides = [1, 1, 1]} : vector<2x8x32xbf16> to vector<2x8x8xbf16>
    %145 = vector.extract_strided_slice %36 {offsets = [0, 0, 24], sizes = [2, 8, 8], strides = [1, 1, 1]} : vector<2x8x32xbf16> to vector<2x8x8xbf16>
    %cst_50 = arith.constant 0xFF800000 : f32
    %146 = vector.broadcast %cst_50 : f32 to vector<2x8x1xf32>
    %cst_51 = arith.constant 0.000000e+00 : f32
    %147 = vector.broadcast %cst_51 : f32 to vector<2x8x1xf32>
    %cst_52 = arith.constant 0.000000e+00 : f32
    %148 = vector.broadcast %cst_52 : f32 to vector<2x8x8xf32>
    "tpu.trace_start"() <{level = 10 : i32, message = "bqd,bkd->bqk"}> : () -> ()
    %cst_53 = arith.constant dense<0.000000e+00> : vector<2x8x8xf32>
    %149 = tpu.matmul %143, %144, %cst_53 {dimension_numbers = #tpu.dot_dimension_numbers<[2], [2], [1], [1], [0, 0, 0, 1, 1, 1], [0], [0]>} : vector<2x8x8xbf16>, vector<2x8x8xbf16>, vector<2x8x8xf32> -> vector<2x8x8xf32>
    "tpu.trace_stop"() : () -> ()
    %150 = vector.broadcast %9 : vector<2x1x8xf32> to vector<2x8x8xf32>
    %151 = arith.addf %149, %150 : vector<2x8x8xf32>
    %cst_54 = arith.constant dense<0xFF800000> : vector<2x8xf32>
    %152 = vector.multi_reduction <maximumf>, %151, %cst_54 [2] : vector<2x8x8xf32> to vector<2x8xf32>
    %153 = vector.shape_cast %152 : vector<2x8xf32> to vector<2x8x1xf32>
    %154 = arith.maximumf %146, %153 : vector<2x8x1xf32>
    %155 = arith.subf %146, %154 : vector<2x8x1xf32>
    %156 = math.exp %155 : vector<2x8x1xf32>
    %157 = vector.broadcast %154 : vector<2x8x1xf32> to vector<2x8x8xf32>
    %158 = arith.subf %151, %157 : vector<2x8x8xf32>
    %159 = math.exp %158 : vector<2x8x8xf32>
    %160 = arith.mulf %156, %147 : vector<2x8x1xf32>
    %cst_55 = arith.constant dense<0.000000e+00> : vector<2x8xf32>
    %161 = vector.multi_reduction <add>, %159, %cst_55 [2] : vector<2x8x8xf32> to vector<2x8xf32>
    %162 = vector.shape_cast %161 : vector<2x8xf32> to vector<2x8x1xf32>
    %163 = arith.addf %160, %162 : vector<2x8x1xf32>
    %164 = vector.broadcast %156 : vector<2x8x1xf32> to vector<2x8x8xf32>
    %165 = arith.mulf %164, %148 : vector<2x8x8xf32>
    %166 = arith.truncf %159 : vector<2x8x8xf32> to vector<2x8x8xbf16>
    "tpu.trace_start"() <{level = 10 : i32, message = "bqk,bkd->bqd"}> : () -> ()
    %cst_56 = arith.constant dense<0.000000e+00> : vector<2x8x8xf32>
    %167 = tpu.matmul %166, %145, %cst_56 {dimension_numbers = #tpu.dot_dimension_numbers<[2], [1], [1], [2], [0, 0, 0, 1, 1, 2], [0], [0]>} : vector<2x8x8xbf16>, vector<2x8x8xbf16>, vector<2x8x8xf32> -> vector<2x8x8xf32>
    "tpu.trace_stop"() : () -> ()
    %168 = arith.addf %165, %167 : vector<2x8x8xf32>
    %169 = tpu.reciprocal %163 {approx = true} : vector<2x8x1xf32> -> vector<2x8x1xf32>
    %170 = vector.broadcast %169 : vector<2x8x1xf32> to vector<2x8x8xf32>
    %171 = arith.mulf %168, %170 : vector<2x8x8xf32>
    %172 = vector.shape_cast %171 : vector<2x8x8xf32> to vector<16x8xf32>
    %173 = arith.truncf %172 : vector<16x8xf32> to vector<16x8xbf16>
    %c0_57 = arith.constant 0 : index
    %c24 = arith.constant 24 : index
    %c0_58 = arith.constant 0 : index
    %174 = vector.load %arg6[%c0_57, %c24, %c0_58] : memref<1x32x32xbf16, #tpu.memory_space<vmem>>, vector<1x8x32xbf16>
    %175 = vector.shape_cast %174 : vector<1x8x32xbf16> to vector<8x32xbf16>
    %cst_59 = arith.constant dense<0.000000e+00> : vector<16x32xf32>
    %176 = tpu.matmul %173, %175, %cst_59 {dimension_numbers = #tpu.dot_dimension_numbers<[1], [0], [0], [1], [0, 0, 1, 1], [], []>} : vector<16x8xbf16>, vector<8x32xbf16>, vector<16x32xf32> -> vector<16x32xf32>
    %177 = arith.addf %142, %176 : vector<16x32xf32>
    %178 = vector.broadcast %12 : vector<1x32xf32> to vector<16x32xf32>
    %179 = arith.addf %177, %178 : vector<16x32xf32>
    %180 = arith.addf %4, %179 : vector<16x32xf32>
    %cst_60 = arith.constant dense<0.000000e+00> : vector<16xf32>
    %181 = vector.multi_reduction <add>, %180, %cst_60 [1] : vector<16x32xf32> to vector<16xf32>
    %182 = vector.shape_cast %181 : vector<16xf32> to vector<16x1xf32>
    %cst_61 = arith.constant 3.200000e+01 : f32
    %183 = vector.broadcast %cst_61 : f32 to vector<16x1xf32>
    %184 = arith.divf %182, %183 : vector<16x1xf32>
    %185 = vector.broadcast %184 : vector<16x1xf32> to vector<16x32xf32>
    %186 = arith.subf %180, %185 : vector<16x32xf32>
    %187 = arith.mulf %186, %186 : vector<16x32xf32>
    %cst_62 = arith.constant dense<0.000000e+00> : vector<16xf32>
    %188 = vector.multi_reduction <add>, %187, %cst_62 [1] : vector<16x32xf32> to vector<16xf32>
    %189 = vector.shape_cast %188 : vector<16xf32> to vector<16x1xf32>
    %cst_63 = arith.constant 3.200000e+01 : f32
    %190 = vector.broadcast %cst_63 : f32 to vector<16x1xf32>
    %191 = arith.divf %189, %190 : vector<16x1xf32>
    %192 = vector.broadcast %184 : vector<16x1xf32> to vector<16x32xf32>
    %193 = arith.subf %180, %192 : vector<16x32xf32>
    %cst_64 = arith.constant 9.99999974E-6 : f32
    %194 = vector.broadcast %cst_64 : f32 to vector<16x1xf32>
    %195 = arith.addf %191, %194 : vector<16x1xf32>
    %196 = math.rsqrt %195 : vector<16x1xf32>
    %197 = vector.broadcast %196 : vector<16x1xf32> to vector<16x32xf32>
    %198 = arith.mulf %193, %197 : vector<16x32xf32>
    %199 = vector.broadcast %13 : vector<1x32xf32> to vector<16x32xf32>
    %200 = arith.mulf %198, %199 : vector<16x32xf32>
    %201 = vector.broadcast %14 : vector<1x32xf32> to vector<16x32xf32>
    %202 = arith.addf %200, %201 : vector<16x32xf32>
    %203 = arith.truncf %202 : vector<16x32xf32> to vector<16x32xbf16>
    %cst_65 = arith.constant 0.000000e+00 : f32
    %204 = vector.broadcast %cst_65 : f32 to vector<16x32xf32>
    %c0_66 = arith.constant 0 : index
    %c0_67 = arith.constant 0 : index
    %c0_68 = arith.constant 0 : index
    %205 = vector.load %arg7[%c0_66, %c0_67, %c0_68] : memref<1x32x64xbf16, #tpu.memory_space<vmem>>, vector<1x32x64xbf16>
    %206 = vector.shape_cast %205 : vector<1x32x64xbf16> to vector<32x64xbf16>
    %cst_69 = arith.constant dense<0.000000e+00> : vector<16x64xf32>
    %207 = tpu.matmul %203, %206, %cst_69 {dimension_numbers = #tpu.dot_dimension_numbers<[1], [0], [0], [1], [0, 0, 1, 1], [], []>} : vector<16x32xbf16>, vector<32x64xbf16>, vector<16x64xf32> -> vector<16x64xf32>
    %c0_70 = arith.constant 0 : index
    %c0_71 = arith.constant 0 : index
    %c0_72 = arith.constant 0 : index
    %208 = vector.load %arg8[%c0_70, %c0_71, %c0_72] : memref<1x1x64xf32, #tpu.memory_space<vmem>>, vector<1x1x64xf32>
    %209 = vector.shape_cast %208 : vector<1x1x64xf32> to vector<1x64xf32>
    %210 = vector.broadcast %209 : vector<1x64xf32> to vector<16x64xf32>
    %211 = arith.addf %207, %210 : vector<16x64xf32>
    %cst_73 = arith.constant 0.000000e+00 : f32
    %212 = vector.broadcast %cst_73 : f32 to vector<16x64xf32>
    %213 = arith.maximumf %211, %212 : vector<16x64xf32>
    %214 = arith.truncf %213 : vector<16x64xf32> to vector<16x64xbf16>
    %c0_74 = arith.constant 0 : index
    %c0_75 = arith.constant 0 : index
    %c0_76 = arith.constant 0 : index
    %215 = vector.load %arg9[%c0_74, %c0_75, %c0_76] : memref<1x64x32xbf16, #tpu.memory_space<vmem>>, vector<1x64x32xbf16>
    %216 = vector.shape_cast %215 : vector<1x64x32xbf16> to vector<64x32xbf16>
    %cst_77 = arith.constant dense<0.000000e+00> : vector<16x32xf32>
    %217 = tpu.matmul %214, %216, %cst_77 {dimension_numbers = #tpu.dot_dimension_numbers<[1], [0], [0], [1], [0, 0, 1, 1], [], []>} : vector<16x64xbf16>, vector<64x32xbf16>, vector<16x32xf32> -> vector<16x32xf32>
    %218 = arith.addf %204, %217 : vector<16x32xf32>
    %219 = vector.broadcast %15 : vector<1x32xf32> to vector<16x32xf32>
    %220 = arith.addf %218, %219 : vector<16x32xf32>
    %221 = arith.addf %202, %220 : vector<16x32xf32>
    %cst_78 = arith.constant dense<0.000000e+00> : vector<16xf32>
    %222 = vector.multi_reduction <add>, %221, %cst_78 [1] : vector<16x32xf32> to vector<16xf32>
    %223 = vector.shape_cast %222 : vector<16xf32> to vector<16x1xf32>
    %cst_79 = arith.constant 3.200000e+01 : f32
    %224 = vector.broadcast %cst_79 : f32 to vector<16x1xf32>
    %225 = arith.divf %223, %224 : vector<16x1xf32>
    %226 = vector.broadcast %225 : vector<16x1xf32> to vector<16x32xf32>
    %227 = arith.subf %221, %226 : vector<16x32xf32>
    %228 = arith.mulf %227, %227 : vector<16x32xf32>
    %cst_80 = arith.constant dense<0.000000e+00> : vector<16xf32>
    %229 = vector.multi_reduction <add>, %228, %cst_80 [1] : vector<16x32xf32> to vector<16xf32>
    %230 = vector.shape_cast %229 : vector<16xf32> to vector<16x1xf32>
    %cst_81 = arith.constant 3.200000e+01 : f32
    %231 = vector.broadcast %cst_81 : f32 to vector<16x1xf32>
    %232 = arith.divf %230, %231 : vector<16x1xf32>
    %233 = vector.broadcast %225 : vector<16x1xf32> to vector<16x32xf32>
    %234 = arith.subf %221, %233 : vector<16x32xf32>
    %cst_82 = arith.constant 9.99999974E-6 : f32
    %235 = vector.broadcast %cst_82 : f32 to vector<16x1xf32>
    %236 = arith.addf %232, %235 : vector<16x1xf32>
    %237 = math.rsqrt %236 : vector<16x1xf32>
    %238 = vector.broadcast %237 : vector<16x1xf32> to vector<16x32xf32>
    %239 = arith.mulf %234, %238 : vector<16x32xf32>
    %240 = vector.broadcast %16 : vector<1x32xf32> to vector<16x32xf32>
    %241 = arith.mulf %239, %240 : vector<16x32xf32>
    %242 = vector.broadcast %17 : vector<1x32xf32> to vector<16x32xf32>
    %243 = arith.addf %241, %242 : vector<16x32xf32>
    %244 = vector.shape_cast %243 : vector<16x32xf32> to vector<2x8x32xf32>
    %c0_83 = arith.constant 0 : index
    %c0_84 = arith.constant 0 : index
    %c0_85 = arith.constant 0 : index
    %245 = vector.load %arg12[%c0_83, %c0_84, %c0_85] : memref<2x8x32xf32, #tpu.memory_space<vmem>>, vector<2x8x32xf32>
    tpu.vector_store %arg12[%c0_83, %c0_84, %c0_85], %244 {strides = array<i32>} : memref<2x8x32xf32, #tpu.memory_space<vmem>>, vector<2x8x32xf32>,
    %c1_i32 = arith.constant 1 : i32
    %246 = arith.cmpi eq, %arg1, %c1_i32 : i32
    %247 = arith.extui %246 : i1 to i32
    %c0_i32_86 = arith.constant 0 : i32
    %248 = arith.cmpi ne, %247, %c0_i32_86 : i32
    scf.if %248 {
      %249 = vector.shape_cast %243 : vector<16x32xf32> to vector<2x8x32xf32>
      %c0_87 = arith.constant 0 : index
      %c0_88 = arith.constant 0 : index
      %c0_89 = arith.constant 0 : index
      %250 = vector.load %arg11[%c0_87, %c0_88, %c0_89] : memref<2x8x32xf32, #tpu.memory_space<vmem>>, vector<2x8x32xf32>
      tpu.vector_store %arg11[%c0_87, %c0_88, %c0_89], %249 {strides = array<i32>} : memref<2x8x32xf32, #tpu.memory_space<vmem>>, vector<2x8x32xf32>,
    } else {
    }
    return
  }
  func.func @transform_0(%arg0: i32, %arg1: i32) -> (i32, i32, i32) {
    %c0_i32 = arith.constant 0 : i32
    %c0_i32_0 = arith.constant 0 : i32
    %c0_i32_1 = arith.constant 0 : i32
    return %arg0, %c0_i32, %c0_i32_0 : i32, i32, i32
  }
  func.func @transform_1(%arg0: i32, %arg1: i32) -> (i32, i32, i32) {
    %c0_i32 = arith.constant 0 : i32
    %c0_i32_0 = arith.constant 0 : i32
    %c0_i32_1 = arith.constant 0 : i32
    return %arg0, %c0_i32, %c0_i32_0 : i32, i32, i32
  }
  func.func @transform_2(%arg0: i32, %arg1: i32) -> (i32, i32, i32) {
    %c0_i32 = arith.constant 0 : i32
    %c0_i32_0 = arith.constant 0 : i32
    %c0_i32_1 = arith.constant 0 : i32
    return %arg1, %c0_i32, %c0_i32_0 : i32, i32, i32
  }
  func.func @transform_3(%arg0: i32, %arg1: i32) -> (i32, i32, i32) {
    %c0_i32 = arith.constant 0 : i32
    %c0_i32_0 = arith.constant 0 : i32
    %c0_i32_1 = arith.constant 0 : i32
    return %arg1, %c0_i32, %c0_i32_0 : i32, i32, i32
  }
  func.func @transform_4(%arg0: i32, %arg1: i32) -> (i32, i32, i32) {
    %c0_i32 = arith.constant 0 : i32
    %c0_i32_0 = arith.constant 0 : i32
    %c0_i32_1 = arith.constant 0 : i32
    return %arg1, %c0_i32, %c0_i32_0 : i32, i32, i32
  }
  func.func @transform_5(%arg0: i32, %arg1: i32) -> (i32, i32, i32) {
    %c0_i32 = arith.constant 0 : i32
    %c0_i32_0 = arith.constant 0 : i32
    %c0_i32_1 = arith.constant 0 : i32
    return %arg1, %c0_i32, %c0_i32_0 : i32, i32, i32
  }
  func.func @transform_6(%arg0: i32, %arg1: i32) -> (i32, i32, i32) {
    %c0_i32 = arith.constant 0 : i32
    %c0_i32_0 = arith.constant 0 : i32
    %c0_i32_1 = arith.constant 0 : i32
    return %arg1, %c0_i32, %c0_i32_0 : i32, i32, i32
  }
  func.func @transform_7(%arg0: i32, %arg1: i32) -> (i32, i32, i32) {
    %c0_i32 = arith.constant 0 : i32
    %c0_i32_0 = arith.constant 0 : i32
    %c0_i32_1 = arith.constant 0 : i32
    return %arg1, %c0_i32, %c0_i32_0 : i32, i32, i32
  }
  func.func @transform_8(%arg0: i32, %arg1: i32) -> (i32, i32, i32) {
    %c0_i32 = arith.constant 0 : i32
    %c0_i32_0 = arith.constant 0 : i32
    %c0_i32_1 = arith.constant 0 : i32
    return %arg1, %c0_i32, %c0_i32_0 : i32, i32, i32
  }
  func.func @transform_9(%arg0: i32, %arg1: i32) -> (i32, i32, i32) {
    %c0_i32 = arith.constant 0 : i32
    %c0_i32_0 = arith.constant 0 : i32
    %c0_i32_1 = arith.constant 0 : i32
    return %arg0, %c0_i32, %c0_i32_0 : i32, i32, i32
  }
}

</mosaic_0001>

<llo_original>
// kernel: tpu_custom_call.1
$region0: #{tpu_custom_call.1}
  #allocation0 [shape = 'u32[]', space=smem, size = 0x4, offset = 0x4, fixed_abs, tag = 'smem constant byte address 0x4 - core index']
  #allocation1 [shape = 'u32[144,128]{1,0:T(1,128)}', space=vmem, size = 0x12000, scoped, tag = 'internal scratch']
  #allocation2 [shape = 'f32[2,8,32]{2,1,0:T(8,128)}', space=vmem, size = 0x2000, scoped, tag = 'scratch operand']
  %s0 = inlined_call_operand.vmem [shape: bf16[2,8,32], index: 0, kind: input, shape index: {}]
  %s1 = inlined_call_operand.vmem [shape: f32[2,1,8], index: 1, kind: input, shape index: {}]
  %s2 = inlined_call_operand.vmem [shape: bf16[2,32,96], index: 2, kind: input, shape index: {}]
  %s3 = inlined_call_operand.vmem [shape: f32[2,1,96], index: 3, kind: input, shape index: {}]
  %s4 = inlined_call_operand.vmem [shape: bf16[2,32,32], index: 4, kind: input, shape index: {}]
  %s5 = inlined_call_operand.vmem [shape: bf16[2,32,64], index: 5, kind: input, shape index: {}]
  %s6 = inlined_call_operand.vmem [shape: f32[2,1,64], index: 6, kind: input, shape index: {}]
  %s7 = inlined_call_operand.vmem [shape: bf16[2,64,32], index: 7, kind: input, shape index: {}]
  %s8 = inlined_call_operand.vmem [shape: f32[2,6,32], index: 8, kind: input, shape index: {}]
  %s9 = inlined_call_operand.hbm [shape: f32[2,8,32], index: 9, kind: output, shape index: {}]
  %s10 = sld [smem:[#allocation0]]
  $region77: #{tpu_custom_call.1} parent=0
    _
  %s12 = ssub.s32 1, %s10
  %s13 = scalar_select 0, %s12, %s10
  $region1: #{tpu_custom_call.1} parent=0
    #allocation3 [shape = 'u8[8192]{0}', space=vmem, size = 0x2000, scoped, tag = 'output window, operand 0, single buffered']
    #allocation4 [shape = 's32[2]{0}', space=sflag, size = 0x8, scoped, tag = 'scoped memory for tpu_custom_call.1']
    %14 = vsyncpa [#allocation4], 0
    loop: start=0, step=1, limit=4
    $region2: #{tpu_custom_call.1} parent=1 // loop_pre_header
      _
    $region3: #{tpu_custom_call.1} parent=1 // loop_header
      %s16 = sphi 0, %s20
      %p17 = scmp.ge.s32.totalorder %s16, 4
      %s23 = sphi 0, %s35
      %s24 = sphi 0, %s31
      %s25 = sphi 0, %s23
      %s26 = sphi 0, %s24
      %s27 = sphi 0, %s25
      %s28 = sphi 0, %s26
      %s38 = sphi 0, %s40
      %s41 = sphi 0, %s38
      %s42 = sphi 0, %s41
      %s58 = sphi 0, %s42
      %s64 = sphi 0, %s66
      %s67 = sphi 0, %s64
      %s68 = sphi 0, %s67
      %s84 = sphi 0, %s68
      %s90 = sphi 0, %s92
      %s93 = sphi 0, %s90
      %s94 = sphi 0, %s93
      %s110 = sphi 0, %s94
      %s116 = sphi 0, %s118
      %s119 = sphi 0, %s116
      %s120 = sphi 0, %s119
      %s136 = sphi 0, %s120
      %s142 = sphi 0, %s144
      %s145 = sphi 0, %s142
      %s146 = sphi 0, %s145
      %s162 = sphi 0, %s146
      %s168 = sphi 0, %s170
      %s171 = sphi 0, %s168
      %s172 = sphi 0, %s171
      %s188 = sphi 0, %s172
      %s194 = sphi 0, %s196
      %s197 = sphi 0, %s194
      %s198 = sphi 0, %s197
      %s214 = sphi 0, %s198
      %s220 = sphi 0, %s222
      %s223 = sphi 0, %s220
      %s224 = sphi 0, %s223
      %s240 = sphi 0, %s224
      %s246 = sphi 0, %s248
      %s249 = sphi 0, %s246
      %s250 = sphi 0, %s249
      %s266 = sphi 0, %s250
      %s272 = sphi 0, %s274
      %s275 = sphi 0, %s272
      %s276 = sphi 0, %s275
      %s292 = sphi 0, %s276
    $region4: #{tpu_custom_call.1} parent=1 // loop_header_branch
      %19 = sbr.rel (%p17) target = $region8
    $region5: #{tpu_custom_call.1} parent=1 // loop_body
      %s21 = ssub.s32 %s16, 1
      %s22 = ssub.s32 %s16, 2
      %s29 = sadd.s32 1, %s24
      %p30 = scmp.ge.s32.totalorder %s29, 2
      %s31 = scalar_select %p30, 0, %s29
      %s32 = sadd.s32 1, %s23
      %s33 = scalar_select %p30, %s32, %s23
      %p34 = scmp.ge.s32.totalorder %s33, 1
      %s35 = scalar_select %p34, 0, %s33
      %s36 = ssub.s32 %s23, %s35
      %p37 = scmp.eq.s32.totalorder %s36, 0
      %s39 = sadd.s32 %s38, 1
      %s40 = scalar_select %p37, %s38, %s39
      %p43 = pneg %p37
      %p44 = scmp.eq.s32.totalorder %s16, 1
      %p45 = por %p43, %p44
      %p46 = scmp.ne.s32.totalorder %s38, %s41
      %p47 = scmp.eq.s32.totalorder %s16, 0
      %p48 = por %p46, %p47
      %p49 = scmp.ne.s32.totalorder %s38, %s41
      %p50 = scmp.eq.s32.totalorder %s21, 1
      %p51 = por %p49, %p50
      %p52 = scmp.ne.s32.totalorder %s41, %s42
      %p53 = scmp.eq.s32.totalorder %s21, 0
      %p54 = por %p52, %p53
      %p55 = scmp.ne.s32.totalorder %s41, %s42
      %p56 = scmp.eq.s32.totalorder %s22, 1
      %p57 = por %p55, %p56
      %p59 = scmp.ne.s32.totalorder %s42, %s58
      %p60 = scmp.eq.s32.totalorder %s22, 0
      %p61 = por %p59, %p60
      %s62 = ssub.s32 %s23, %s35
      %p63 = scmp.eq.s32.totalorder %s62, 0
      %s65 = sadd.s32 %s64, 1
      %s66 = scalar_select %p63, %s64, %s65
      %p69 = pneg %p63
      %p70 = scmp.eq.s32.totalorder %s16, 1
      %p71 = por %p69, %p70
      %p72 = scmp.ne.s32.totalorder %s64, %s67
      %p73 = scmp.eq.s32.totalorder %s16, 0
      %p74 = por %p72, %p73
      %p75 = scmp.ne.s32.totalorder %s64, %s67
      %p76 = scmp.eq.s32.totalorder %s21, 1
      %p77 = por %p75, %p76
      %p78 = scmp.ne.s32.totalorder %s67, %s68
      %p79 = scmp.eq.s32.totalorder %s21, 0
      %p80 = por %p78, %p79
      %p81 = scmp.ne.s32.totalorder %s67, %s68
      %p82 = scmp.eq.s32.totalorder %s22, 1
      %p83 = por %p81, %p82
      %p85 = scmp.ne.s32.totalorder %s68, %s84
      %p86 = scmp.eq.s32.totalorder %s22, 0
      %p87 = por %p85, %p86
      %s88 = ssub.s32 %s24, %s31
      %p89 = scmp.eq.s32.totalorder %s88, 0
      %s91 = sadd.s32 %s90, 1
      %s92 = scalar_select %p89, %s90, %s91
      %p95 = pneg %p89
      %p96 = scmp.eq.s32.totalorder %s16, 1
      %p97 = por %p95, %p96
      %p98 = scmp.ne.s32.totalorder %s90, %s93
      %p99 = scmp.eq.s32.totalorder %s16, 0
      %p100 = por %p98, %p99
      %p101 = scmp.ne.s32.totalorder %s90, %s93
      %p102 = scmp.eq.s32.totalorder %s21, 1
      %p103 = por %p101, %p102
      %p104 = scmp.ne.s32.totalorder %s93, %s94
      %p105 = scmp.eq.s32.totalorder %s21, 0
      %p106 = por %p104, %p105
      %p107 = scmp.ne.s32.totalorder %s93, %s94
      %p108 = scmp.eq.s32.totalorder %s22, 1
      %p109 = por %p107, %p108
      %p111 = scmp.ne.s32.totalorder %s94, %s110
      %p112 = scmp.eq.s32.totalorder %s22, 0
      %p113 = por %p111, %p112
      %s114 = ssub.s32 %s24, %s31
      %p115 = scmp.eq.s32.totalorder %s114, 0
      %s117 = sadd.s32 %s116, 1
      %s118 = scalar_select %p115, %s116, %s117
      %p121 = pneg %p115
      %p122 = scmp.eq.s32.totalorder %s16, 1
      %p123 = por %p121, %p122
      %p124 = scmp.ne.s32.totalorder %s116, %s119
      %p125 = scmp.eq.s32.totalorder %s16, 0
      %p126 = por %p124, %p125
      %p127 = scmp.ne.s32.totalorder %s116, %s119
      %p128 = scmp.eq.s32.totalorder %s21, 1
      %p129 = por %p127, %p128
      %p130 = scmp.ne.s32.totalorder %s119, %s120
      %p131 = scmp.eq.s32.totalorder %s21, 0
      %p132 = por %p130, %p131
      %p133 = scmp.ne.s32.totalorder %s119, %s120
      %p134 = scmp.eq.s32.totalorder %s22, 1
      %p135 = por %p133, %p134
      %p137 = scmp.ne.s32.totalorder %s120, %s136
      %p138 = scmp.eq.s32.totalorder %s22, 0
      %p139 = por %p137, %p138
      %s140 = ssub.s32 %s24, %s31
      %p141 = scmp.eq.s32.totalorder %s140, 0
      %s143 = sadd.s32 %s142, 1
      %s144 = scalar_select %p141, %s142, %s143
      %p147 = pneg %p141
      %p148 = scmp.eq.s32.totalorder %s16, 1
      %p149 = por %p147, %p148
      %p150 = scmp.ne.s32.totalorder %s142, %s145
      %p151 = scmp.eq.s32.totalorder %s16, 0
      %p152 = por %p150, %p151
      %p153 = scmp.ne.s32.totalorder %s142, %s145
      %p154 = scmp.eq.s32.totalorder %s21, 1
      %p155 = por %p153, %p154
      %p156 = scmp.ne.s32.totalorder %s145, %s146
      %p157 = scmp.eq.s32.totalorder %s21, 0
      %p158 = por %p156, %p157
      %p159 = scmp.ne.s32.totalorder %s145, %s146
      %p160 = scmp.eq.s32.totalorder %s22, 1
      %p161 = por %p159, %p160
      %p163 = scmp.ne.s32.totalorder %s146, %s162
      %p164 = scmp.eq.s32.totalorder %s22, 0
      %p165 = por %p163, %p164
      %s166 = ssub.s32 %s24, %s31
      %p167 = scmp.eq.s32.totalorder %s166, 0
      %s169 = sadd.s32 %s168, 1
      %s170 = scalar_select %p167, %s168, %s169
      %p173 = pneg %p167
      %p174 = scmp.eq.s32.totalorder %s16, 1
      %p175 = por %p173, %p174
      %p176 = scmp.ne.s32.totalorder %s168, %s171
      %p177 = scmp.eq.s32.totalorder %s16, 0
      %p178 = por %p176, %p177
      %p179 = scmp.ne.s32.totalorder %s168, %s171
      %p180 = scmp.eq.s32.totalorder %s21, 1
      %p181 = por %p179, %p180
      %p182 = scmp.ne.s32.totalorder %s171, %s172
      %p183 = scmp.eq.s32.totalorder %s21, 0
      %p184 = por %p182, %p183
      %p185 = scmp.ne.s32.totalorder %s171, %s172
      %p186 = scmp.eq.s32.totalorder %s22, 1
      %p187 = por %p185, %p186
      %p189 = scmp.ne.s32.totalorder %s172, %s188
      %p190 = scmp.eq.s32.totalorder %s22, 0
      %p191 = por %p189, %p190
      %s192 = ssub.s32 %s24, %s31
      %p193 = scmp.eq.s32.totalorder %s192, 0
      %s195 = sadd.s32 %s194, 1
      %s196 = scalar_select %p193, %s194, %s195
      %p199 = pneg %p193
      %p200 = scmp.eq.s32.totalorder %s16, 1
      %p201 = por %p199, %p200
      %p202 = scmp.ne.s32.totalorder %s194, %s197
      %p203 = scmp.eq.s32.totalorder %s16, 0
      %p204 = por %p202, %p203
      %p205 = scmp.ne.s32.totalorder %s194, %s197
      %p206 = scmp.eq.s32.totalorder %s21, 1
      %p207 = por %p205, %p206
      %p208 = scmp.ne.s32.totalorder %s197, %s198
      %p209 = scmp.eq.s32.totalorder %s21, 0
      %p210 = por %p208, %p209
      %p211 = scmp.ne.s32.totalorder %s197, %s198
      %p212 = scmp.eq.s32.totalorder %s22, 1
      %p213 = por %p211, %p212
      %p215 = scmp.ne.s32.totalorder %s198, %s214
      %p216 = scmp.eq.s32.totalorder %s22, 0
      %p217 = por %p215, %p216
      %s218 = ssub.s32 %s24, %s31
      %p219 = scmp.eq.s32.totalorder %s218, 0
      %s221 = sadd.s32 %s220, 1
      %s222 = scalar_select %p219, %s220, %s221
      %p225 = pneg %p219
      %p226 = scmp.eq.s32.totalorder %s16, 1
      %p227 = por %p225, %p226
      %p228 = scmp.ne.s32.totalorder %s220, %s223
      %p229 = scmp.eq.s32.totalorder %s16, 0
      %p230 = por %p228, %p229
      %p231 = scmp.ne.s32.totalorder %s220, %s223
      %p232 = scmp.eq.s32.totalorder %s21, 1
      %p233 = por %p231, %p232
      %p234 = scmp.ne.s32.totalorder %s223, %s224
      %p235 = scmp.eq.s32.totalorder %s21, 0
      %p236 = por %p234, %p235
      %p237 = scmp.ne.s32.totalorder %s223, %s224
      %p238 = scmp.eq.s32.totalorder %s22, 1
      %p239 = por %p237, %p238
      %p241 = scmp.ne.s32.totalorder %s224, %s240
      %p242 = scmp.eq.s32.totalorder %s22, 0
      %p243 = por %p241, %p242
      %s244 = ssub.s32 %s24, %s31
      %p245 = scmp.eq.s32.totalorder %s244, 0
      %s247 = sadd.s32 %s246, 1
      %s248 = scalar_select %p245, %s246, %s247
      %p251 = pneg %p245
      %p252 = scmp.eq.s32.totalorder %s16, 1
      %p253 = por %p251, %p252
      %p254 = scmp.ne.s32.totalorder %s246, %s249
      %p255 = scmp.eq.s32.totalorder %s16, 0
      %p256 = por %p254, %p255
      %p257 = scmp.ne.s32.totalorder %s246, %s249
      %p258 = scmp.eq.s32.totalorder %s21, 1
      %p259 = por %p257, %p258
      %p260 = scmp.ne.s32.totalorder %s249, %s250
      %p261 = scmp.eq.s32.totalorder %s21, 0
      %p262 = por %p260, %p261
      %p263 = scmp.ne.s32.totalorder %s249, %s250
      %p264 = scmp.eq.s32.totalorder %s22, 1
      %p265 = por %p263, %p264
      %p267 = scmp.ne.s32.totalorder %s250, %s266
      %p268 = scmp.eq.s32.totalorder %s22, 0
      %p269 = por %p267, %p268
      %s270 = ssub.s32 %s23, %s35
      %p271 = scmp.eq.s32.totalorder %s270, 0
      %s273 = sadd.s32 %s272, 1
      %s274 = scalar_select %p271, %s272, %s273
      %p277 = pneg %p271
      %p278 = scmp.eq.s32.totalorder %s16, 1
      %p279 = por %p277, %p278
      %p280 = scmp.ne.s32.totalorder %s272, %s275
      %p281 = scmp.eq.s32.totalorder %s16, 0
      %p282 = por %p280, %p281
      %p283 = scmp.ne.s32.totalorder %s272, %s275
      %p284 = scmp.eq.s32.totalorder %s21, 1
      %p285 = por %p283, %p284
      %p286 = scmp.ne.s32.totalorder %s275, %s276
      %p287 = scmp.eq.s32.totalorder %s21, 0
      %p288 = por %p286, %p287
      %p289 = scmp.ne.s32.totalorder %s275, %s276
      %p290 = scmp.eq.s32.totalorder %s22, 1
      %p291 = por %p289, %p290
      %p293 = scmp.ne.s32.totalorder %s276, %s292
      %p294 = scmp.eq.s32.totalorder %s22, 0
      %p295 = por %p293, %p294
      %p296 = scmp.le.s32.totalorder 1, %s16
      %p297 = scmp.lt.s32.totalorder %s16, 3
      %p298 = pnand %p296, %p297
      %p299 = pneg %p298
      // Predicated region
      $region9: #{tpu_custom_call.1} parent=5 // pred_check
        _
      $region10: #{tpu_custom_call.1} parent=5 // pred_check_branch
        %301 = sbr.rel (%p298) target = $region12
      $region11: #{tpu_custom_call.1} parent=5 // pred_region
        %s302 = ssub.s32 %s16, 1
        // Predicated region
        $region13: #{tpu_custom_call.1} parent=11 // pred_check
          %p303 = pneg %p54
        $region14: #{tpu_custom_call.1} parent=11 // pred_check_branch
          %305 = sbr.rel (%p303) target = $region16
        $region15: #{tpu_custom_call.1} parent=11 // pred_region
          %s306 = smul.u32 2, %s25
          %p307 = scmp.lt.s32.totalorder %s306, 1
          %s308 = scalar_select %p307, %s306, 1
          %s309 = smul.addr %s308, 4
          %s310 = scalar_lea.vmem %s0, %s309
          %s311 = smul.u32 2, %s25
        $region16: #{tpu_custom_call.1} parent=11 // pred_fallthru
          _
        // Predicated region
        $region17: #{tpu_custom_call.1} parent=11 // pred_check
          %p312 = pneg %p80
        $region18: #{tpu_custom_call.1} parent=11 // pred_check_branch
          %314 = sbr.rel (%p312) target = $region20
        $region19: #{tpu_custom_call.1} parent=11 // pred_region
          %s315 = smul.u32 2, %s25
          %p316 = scmp.lt.s32.totalorder %s315, 1
          %s317 = scalar_select %p316, %s315, 1
          %s318 = scalar_lea.vmem %s1, %s317
          %s319 = smul.u32 2, %s25
        $region20: #{tpu_custom_call.1} parent=11 // pred_fallthru
          _
      $region12: #{tpu_custom_call.1} parent=5 // pred_fallthru
        _
      %p320 = scmp.lt.s32.totalorder %s16, 2
      // Predicated region
      $region21: #{tpu_custom_call.1} parent=5 // pred_check
        %p321 = pneg %p320
      $region22: #{tpu_custom_call.1} parent=5 // pred_check_branch
        %323 = sbr.rel (%p321) target = $region24
      $region23: #{tpu_custom_call.1} parent=5 // pred_region
        // Predicated region
        $region25: #{tpu_custom_call.1} parent=23 // pred_check
          %p324 = pneg %p100
        $region26: #{tpu_custom_call.1} parent=23 // pred_check_branch
          %326 = sbr.rel (%p324) target = $region28
        $region27: #{tpu_custom_call.1} parent=23 // pred_region
          %p327 = scmp.lt.s32.totalorder %s24, 1
          %s328 = scalar_select %p327, %s24, 1
          %s329 = smul.addr %s328, 4
          %s330 = smul.addr %s329, 4
          %s331 = scalar_lea.vmem %s2, %s330
        $region28: #{tpu_custom_call.1} parent=23 // pred_fallthru
          _
        // Predicated region
        $region29: #{tpu_custom_call.1} parent=23 // pred_check
          %p332 = pneg %p126
        $region30: #{tpu_custom_call.1} parent=23 // pred_check_branch
          %334 = sbr.rel (%p332) target = $region32
        $region31: #{tpu_custom_call.1} parent=23 // pred_region
          %p335 = scmp.lt.s32.totalorder %s24, 1
          %s336 = scalar_select %p335, %s24, 1
          %s337 = scalar_lea.vmem %s3, %s336
        $region32: #{tpu_custom_call.1} parent=23 // pred_fallthru
          _
        // Predicated region
        $region33: #{tpu_custom_call.1} parent=23 // pred_check
          %p338 = pneg %p152
        $region34: #{tpu_custom_call.1} parent=23 // pred_check_branch
          %340 = sbr.rel (%p338) target = $region36
        $region35: #{tpu_custom_call.1} parent=23 // pred_region
          %p341 = scmp.lt.s32.totalorder %s24, 1
          %s342 = scalar_select %p341, %s24, 1
          %s343 = smul.addr %s342, 4
          %s344 = smul.addr %s343, 4
          %s345 = scalar_lea.vmem %s4, %s344
        $region36: #{tpu_custom_call.1} parent=23 // pred_fallthru
          _
        // Predicated region
        $region37: #{tpu_custom_call.1} parent=23 // pred_check
          %p346 = pneg %p178
        $region38: #{tpu_custom_call.1} parent=23 // pred_check_branch
          %348 = sbr.rel (%p346) target = $region40
        $region39: #{tpu_custom_call.1} parent=23 // pred_region
          %p349 = scmp.lt.s32.totalorder %s24, 1
          %s350 = scalar_select %p349, %s24, 1
          %s351 = smul.addr %s350, 4
          %s352 = smul.addr %s351, 4
          %s353 = scalar_lea.vmem %s5, %s352
        $region40: #{tpu_custom_call.1} parent=23 // pred_fallthru
          _
        // Predicated region
        $region41: #{tpu_custom_call.1} parent=23 // pred_check
          %p354 = pneg %p204
        $region42: #{tpu_custom_call.1} parent=23 // pred_check_branch
          %356 = sbr.rel (%p354) target = $region44
        $region43: #{tpu_custom_call.1} parent=23 // pred_region
          %p357 = scmp.lt.s32.totalorder %s24, 1
          %s358 = scalar_select %p357, %s24, 1
          %s359 = scalar_lea.vmem %s6, %s358
        $region44: #{tpu_custom_call.1} parent=23 // pred_fallthru
          _
        // Predicated region
        $region45: #{tpu_custom_call.1} parent=23 // pred_check
          %p360 = pneg %p230
        $region46: #{tpu_custom_call.1} parent=23 // pred_check_branch
          %362 = sbr.rel (%p360) target = $region48
        $region47: #{tpu_custom_call.1} parent=23 // pred_region
          %p363 = scmp.lt.s32.totalorder %s24, 1
          %s364 = scalar_select %p363, %s24, 1
          %s365 = smul.addr %s364, 8
          %s366 = smul.addr %s365, 4
          %s367 = scalar_lea.vmem %s7, %s366
        $region48: #{tpu_custom_call.1} parent=23 // pred_fallthru
          _
        // Predicated region
        $region49: #{tpu_custom_call.1} parent=23 // pred_check
          %p368 = pneg %p256
        $region50: #{tpu_custom_call.1} parent=23 // pred_check_branch
          %370 = sbr.rel (%p368) target = $region52
        $region51: #{tpu_custom_call.1} parent=23 // pred_region
          %p371 = scmp.lt.s32.totalorder %s24, 1
          %s372 = scalar_select %p371, %s24, 1
          %s373 = smul.addr %s372, 8
          %s374 = scalar_lea.vmem %s8, %s373
        $region52: #{tpu_custom_call.1} parent=23 // pred_fallthru
          _
      $region24: #{tpu_custom_call.1} parent=5 // pred_fallthru
        _
      %p375 = scmp.le.s32.totalorder 1, %s16
      %p376 = scmp.lt.s32.totalorder %s16, 3
      %p377 = pnand %p375, %p376
      %p378 = pneg %p377
      // Predicated region
      $region53: #{tpu_custom_call.1} parent=5 // pred_check
        _
      $region54: #{tpu_custom_call.1} parent=5 // pred_check_branch
        %380 = sbr.rel (%p377) target = $region56
      $region55: #{tpu_custom_call.1} parent=5 // pred_region
        %s381 = ssub.s32 %s16, 1
        %s382 = smul.u32 2, %s25
        %p383 = scmp.lt.s32.totalorder %s382, 1
        %s384 = scalar_select %p383, %s382, 1
        %s385 = smul.addr %s384, 4
        %s386 = scalar_lea.vmem %s0, %s385
        %p387 = pneg %p54
        %p388 = pneg %p51
        %s389 = smul.u32 2, %s25
        %p390 = scmp.lt.s32.totalorder %s389, 1
        %s391 = scalar_select %p390, %s389, 1
        %s392 = scalar_lea.vmem %s1, %s391
        %p393 = pneg %p80
        %p394 = pneg %p77
        %p395 = scmp.lt.s32.totalorder %s26, 1
        %s396 = scalar_select %p395, %s26, 1
        %s397 = smul.addr %s396, 4
        %s398 = smul.addr %s397, 4
        %s399 = scalar_lea.vmem %s2, %s398
        %p400 = pneg %p106
        %p401 = pneg %p103
        %p402 = scmp.lt.s32.totalorder %s26, 1
        %s403 = scalar_select %p402, %s26, 1
        %s404 = scalar_lea.vmem %s3, %s403
        %p405 = pneg %p132
        %p406 = pneg %p129
        %p407 = scmp.lt.s32.totalorder %s26, 1
        %s408 = scalar_select %p407, %s26, 1
        %s409 = smul.addr %s408, 4
        %s410 = smul.addr %s409, 4
        %s411 = scalar_lea.vmem %s4, %s410
        %p412 = pneg %p158
        %p413 = pneg %p155
        %p414 = scmp.lt.s32.totalorder %s26, 1
        %s415 = scalar_select %p414, %s26, 1
        %s416 = smul.addr %s415, 4
        %s417 = smul.addr %s416, 4
        %s418 = scalar_lea.vmem %s5, %s417
        %p419 = pneg %p184
        %p420 = pneg %p181
        %p421 = scmp.lt.s32.totalorder %s26, 1
        %s422 = scalar_select %p421, %s26, 1
        %s423 = scalar_lea.vmem %s6, %s422
        %p424 = pneg %p210
        %p425 = pneg %p207
        %p426 = scmp.lt.s32.totalorder %s26, 1
        %s427 = scalar_select %p426, %s26, 1
        %s428 = smul.addr %s427, 8
        %s429 = smul.addr %s428, 4
        %s430 = scalar_lea.vmem %s7, %s429
        %p431 = pneg %p236
        %p432 = pneg %p233
        %p433 = scmp.lt.s32.totalorder %s26, 1
        %s434 = scalar_select %p433, %s26, 1
        %s435 = smul.addr %s434, 8
        %s436 = scalar_lea.vmem %s8, %s435
        %p437 = pneg %p262
        %p438 = pneg %p259
        %p439 = pneg %p288
        %p440 = pneg %p285
        %s441 = smul.u32 2, %s25
        %p442 = scmp.lt.s32.totalorder %s441, 1
        %s443 = scalar_select %p442, %s441, 1
        %s444 = smul.addr %s443, 4
        %s445 = scalar_lea.vmem %s0, %s444
        %s446 = smul.u32 2, %s25
        %s447 = smul.u32 2, %s25
        %p448 = scmp.lt.s32.totalorder %s447, 1
        %s449 = scalar_select %p448, %s447, 1
        %s450 = scalar_lea.vmem %s1, %s449
        %s451 = smul.u32 2, %s25
        %p452 = scmp.lt.s32.totalorder %s26, 1
        %s453 = scalar_select %p452, %s26, 1
        %s454 = smul.addr %s453, 4
        %s455 = smul.addr %s454, 4
        %s456 = scalar_lea.vmem %s2, %s455
        %p457 = scmp.lt.s32.totalorder %s26, 1
        %s458 = scalar_select %p457, %s26, 1
        %s459 = scalar_lea.vmem %s3, %s458
        %p460 = scmp.lt.s32.totalorder %s26, 1
        %s461 = scalar_select %p460, %s26, 1
        %s462 = smul.addr %s461, 4
        %s463 = smul.addr %s462, 4
        %s464 = scalar_lea.vmem %s4, %s463
        %p465 = scmp.lt.s32.totalorder %s26, 1
        %s466 = scalar_select %p465, %s26, 1
        %s467 = smul.addr %s466, 4
        %s468 = smul.addr %s467, 4
        %s469 = scalar_lea.vmem %s5, %s468
        %p470 = scmp.lt.s32.totalorder %s26, 1
        %s471 = scalar_select %p470, %s26, 1
        %s472 = scalar_lea.vmem %s6, %s471
        %p473 = scmp.lt.s32.totalorder %s26, 1
        %s474 = scalar_select %p473, %s26, 1
        %s475 = smul.addr %s474, 8
        %s476 = smul.addr %s475, 4
        %s477 = scalar_lea.vmem %s7, %s476
        %p478 = scmp.lt.s32.totalorder %s26, 1
        %s479 = scalar_select %p478, %s26, 1
        %s480 = smul.addr %s479, 8
        %s481 = scalar_lea.vmem %s8, %s480
        %s482 = smul.u32 2, %s25
        %p484 = scmp.eq.s32.totalorder %s26, 0
        // Predicated region
        $region57: #{tpu_custom_call.1} parent=55 // pred_check
          %p485 = pneg %p484
        $region58: #{tpu_custom_call.1} parent=55 // pred_check_branch
          %487 = sbr.rel (%p485) target = $region60
        $region59: #{tpu_custom_call.1} parent=55 // pred_region
          %v488 = vld [vmem:[%s445] sm:$0xf]
          %v489 = vld [vmem:[%s445 + $0x4] sm:$0xf]
          %v490 = vunpack.c.l.bf16 %v488
          %v491 = vunpack.c.l.bf16 %v489
          %vm492 = vcmask 261120
          %493 = vst.msk [vmem:[#allocation2] sm:$0xff] %vm492, %v490
          %494 = vst.msk [vmem:[#allocation2 + $0x8] sm:$0xff] %vm492, %v491
        $region60: #{tpu_custom_call.1} parent=55 // pred_fallthru
          _
        %v495 = vld [vmem:[#allocation2] sm:$0xff]
        %v496 = vld [vmem:[#allocation2 + $0x8] sm:$0xff]
        %v497 = vld [vmem:[%s450] sm:$0x1]
        %v498 = vld [vmem:[%s450 + $0x1] sm:$0x1]
        %v499 = vsub.f32 %v497, 1.0
        %v500 = vsub.f32 %v498, 1.0
        %v501 = vmul.f32 %v499, 1e+10
        %v502 = vmul.f32 %v500, 1e+10
        %v503 = vld [vmem:[%s481] sm:$0x3f]
        %v504 = vpack.c.bf16 %v496, %v495
        %v505 = vld [vmem:[%s456] sm:$0xf]
        %v506 = vld [vmem:[%s456 + $0x4] sm:$0xf]
        %v507 = vld [vmem:[%s456 + $0x8] sm:$0xf]
        %v508 = vld [vmem:[%s456 + $0xc] sm:$0xf]
        %v509 = vld [vmem:[%s459] sm:$0x1]
        %v511 = vlaneseq
        %v512 = vshrl.u32 %v511, 7
        %v513 = vsub.s32 0, %v512
        %v514 = vrot.slane %v509, %v513
        %v520 = vunpack.c.l.b16 %v505
        %v521 = vunpack.c.l.b16 %v506
        %v522 = vunpack.c.l.b16 %v507
        %v523 = vunpack.c.l.b16 %v508
        %v524 = vpack.c.b16 %v521, %v520
        %v525 = vpack.c.b16 %v523, %v522
        %vm528 = vcmask 261120
        %v530 = vsel %vm528, %v504, 0
        %532 = vmatprep.subr.bf16.mxu0 0
        %533 = vmatpush1.bf16.msra.mxu0 %v524
        %534 = vmatprep.subr.bf16.mxu0 0
        %535 = vmatpush1.bf16.msra.mxu0 %v525
        %536 = vmatprep.subr.bf16.mxu0 0
        %537 = vmatpush1.bf16.msra.mxu0 0
        %538 = vmatprep.subr.bf16.mxu0 0
        %539 = vmatpush1.bf16.msra.mxu0 0
        %540 = vmatprep.subr.bf16.mxu0 0
        %541 = vmatpush1.bf16.msra.mxu0 0
        %542 = vmatprep.subr.bf16.mxu0 0
        %543 = vmatpush1.bf16.msra.mxu0 0
        %544 = vmatprep.subr.bf16.mxu0 0
        %545 = vmatpush1.bf16.msra.mxu0 0
        %546 = vmatprep.subr.bf16.mxu0 0
        %547 = vmatpush1.bf16.msra.mxu0 0
        %548 = vmatprep.subr.bf16.mxu0 0
        %549 = vmatpush1.bf16.msra.mxu0 0
        %550 = vmatprep.subr.bf16.mxu0 0
        %551 = vmatpush1.bf16.msra.mxu0 0
        %552 = vmatprep.subr.bf16.mxu0 0
        %553 = vmatpush1.bf16.msra.mxu0 0
        %554 = vmatprep.subr.bf16.mxu0 0
        %555 = vmatpush1.bf16.msra.mxu0 0
        %556 = vmatprep.subr.bf16.mxu0 0
        %557 = vmatpush1.bf16.msra.mxu0 0
        %558 = vmatprep.subr.bf16.mxu0 0
        %559 = vmatpush1.bf16.msra.mxu0 0
        %560 = vmatprep.subr.bf16.mxu0 0
        %561 = vmatpush1.bf16.msra.mxu0 0
        %562 = vmatprep.subr.bf16.mxu0 0
        %563 = vmatpush1.bf16.msra.mxu0 0
        %564 = vmatprep.mubr.bf16.mxu0 0
        %565 = vmatmul.mubr.bf16.gmra.mrb[0].mxu0 %v530
        %v566 = vpop.f32.mrb[0].mxu0
        %v567 = vadd.f32 %v514, %v566
        %v568 = vpop.f32.mrb[0].mxu0
        %v569 = vpop.f32.mrb[0].mxu0
        %v570 = vadd.f32 %v514, %v569
        %v571 = vpop.f32.mrb[0].mxu0
        %572 = vdwg.mxu0
        %v573 = vmul.f32 %v567, 0.35355338
        %v574 = vmul.f32 %v570, 0.35355338
        %v575 = vpack.c.bf16 %v573, %v573
        %v576 = vpack.c.bf16 %v574, %v574
        %v577 = vpack.c.bf16 %v567, %v567
        %v578 = vpack.c.bf16 %v570, %v570
        %v581 = vlaneseq
        %v582 = vshrl.u32 %v581, 7
        %v583 = vsub.s32 0, %v582
        %v584 = vrot.slane %v501, %v583
        %v585 = vlaneseq
        %v586 = vshrl.u32 %v585, 7
        %v587 = vsub.s32 0, %v586
        %v588 = vrot.slane %v502, %v587
        %592 = vrot.lane.b32.xlu0 %v577, 96
        %v593 = vpop.permute.xlu0 %592
        %vm594 = vcmask 64512
        %v596 = vsel %vm594, %v575, 0
        %v599 = vsel %vm594, %v593, 0
        %601 = vmatprep.subr.bf16.mxu0 0
        %602 = vmatpush1.bf16.xpose.msra.mxu0 %v599
        %603 = vmatprep.subr.bf16.mxu0 0
        %604 = vmatpush1.bf16.xpose.msra.mxu0 0
        %605 = vmatprep.subr.bf16.mxu0 0
        %606 = vmatpush1.bf16.xpose.msra.mxu0 0
        %607 = vmatprep.subr.bf16.mxu0 0
        %608 = vmatpush1.bf16.xpose.msra.mxu0 0
        %609 = vmatprep.subr.bf16.mxu0 0
        %610 = vmatpush1.bf16.xpose.msra.mxu0 0
        %611 = vmatprep.subr.bf16.mxu0 0
        %612 = vmatpush1.bf16.xpose.msra.mxu0 0
        %613 = vmatprep.subr.bf16.mxu0 0
        %614 = vmatpush1.bf16.xpose.msra.mxu0 0
        %615 = vmatprep.subr.bf16.mxu0 0
        %616 = vmatpush1.bf16.xpose.msra.mxu0 0
        %617 = vmatprep.subr.bf16.mxu0 0
        %618 = vmatpush1.bf16.xpose.msra.mxu0 0
        %619 = vmatprep.subr.bf16.mxu0 0
        %620 = vmatpush1.bf16.xpose.msra.mxu0 0
        %621 = vmatprep.subr.bf16.mxu0 0
        %622 = vmatpush1.bf16.xpose.msra.mxu0 0
        %623 = vmatprep.subr.bf16.mxu0 0
        %624 = vmatpush1.bf16.xpose.msra.mxu0 0
        %625 = vmatprep.subr.bf16.mxu0 0
        %626 = vmatpush1.bf16.xpose.msra.mxu0 0
        %627 = vmatprep.subr.bf16.mxu0 0
        %628 = vmatpush1.bf16.xpose.msra.mxu0 0
        %629 = vmatprep.subr.bf16.mxu0 0
        %630 = vmatpush1.bf16.xpose.msra.mxu0 0
        %631 = vmatprep.subr.bf16.mxu0 0
        %632 = vmatpush1.bf16.xpose.msra.mxu0 0
        %633 = vmatprep.mubr.bf16.mxu0 0
        %634 = vmatmul.mubr.bf16.gmra.mrb[0].mxu0 %v596
        %v635 = vpop.f32.mrb[0].mxu0
        %v636 = vadd.f32 %v584, %v635
        %v637 = vpop.f32.mrb[0].mxu0
        %v638 = vpop.f32.mrb[0].mxu0
        %v639 = vpop.f32.mrb[0].mxu0
        %640 = vdwg.mxu0
        %642 = vrot.lane.b32.xlu0 %v578, 96
        %v643 = vpop.permute.xlu0 %642
        %v645 = vsel %vm594, %v576, 0
        %v648 = vsel %vm594, %v643, 0
        %650 = vmatprep.subr.bf16.mxu0 0
        %651 = vmatpush1.bf16.xpose.msra.mxu0 %v648
        %652 = vmatprep.subr.bf16.mxu0 0
        %653 = vmatpush1.bf16.xpose.msra.mxu0 0
        %654 = vmatprep.subr.bf16.mxu0 0
        %655 = vmatpush1.bf16.xpose.msra.mxu0 0
        %656 = vmatprep.subr.bf16.mxu0 0
        %657 = vmatpush1.bf16.xpose.msra.mxu0 0
        %658 = vmatprep.subr.bf16.mxu0 0
        %659 = vmatpush1.bf16.xpose.msra.mxu0 0
        %660 = vmatprep.subr.bf16.mxu0 0
        %661 = vmatpush1.bf16.xpose.msra.mxu0 0
        %662 = vmatprep.subr.bf16.mxu0 0
        %663 = vmatpush1.bf16.xpose.msra.mxu0 0
        %664 = vmatprep.subr.bf16.mxu0 0
        %665 = vmatpush1.bf16.xpose.msra.mxu0 0
        %666 = vmatprep.subr.bf16.mxu0 0
        %667 = vmatpush1.bf16.xpose.msra.mxu0 0
        %668 = vmatprep.subr.bf16.mxu0 0
        %669 = vmatpush1.bf16.xpose.msra.mxu0 0
        %670 = vmatprep.subr.bf16.mxu0 0
        %671 = vmatpush1.bf16.xpose.msra.mxu0 0
        %672 = vmatprep.subr.bf16.mxu0 0
        %673 = vmatpush1.bf16.xpose.msra.mxu0 0
        %674 = vmatprep.subr.bf16.mxu0 0
        %675 = vmatpush1.bf16.xpose.msra.mxu0 0
        %676 = vmatprep.subr.bf16.mxu0 0
        %677 = vmatpush1.bf16.xpose.msra.mxu0 0
        %678 = vmatprep.subr.bf16.mxu0 0
        %679 = vmatpush1.bf16.xpose.msra.mxu0 0
        %680 = vmatprep.subr.bf16.mxu0 0
        %681 = vmatpush1.bf16.xpose.msra.mxu0 0
        %682 = vmatprep.mubr.bf16.mxu0 0
        %683 = vmatmul.mubr.bf16.gmra.mrb[0].mxu0 %v645
        %v684 = vpop.f32.mrb[0].mxu0
        %v685 = vadd.f32 %v588, %v684
        %v686 = vpop.f32.mrb[0].mxu0
        %v687 = vpop.f32.mrb[0].mxu0
        %v688 = vpop.f32.mrb[0].mxu0
        %689 = vdwg.mxu0
        %v690 = vsel %vm594, %v636, -inf
        %691 = vmax.xlane.f32.xlu0 %v690
        %v692 = vpop.xlane.xlu0 %691
        %v693 = vsel %vm594, %v685, -inf
        %694 = vmax.xlane.f32.xlu0 %v693
        %v695 = vpop.xlane.xlu0 %694
        %v696 = vsub.f32 -inf, %v692
        %v697 = vsub.f32 -inf, %v695
        %v698 = vmul.f32 %v696, 1.442695
        %v699 = vpow.pop %v698
        %v700 = vmul.f32 %v697, 1.442695
        %v701 = vpow.pop %v700
        %v702 = vsub.f32 %v636, %v692
        %v703 = vsub.f32 %v685, %v695
        %v704 = vmul.f32 %v702, 1.442695
        %v705 = vpow.pop %v704
        %v706 = vmul.f32 %v703, 1.442695
        %v707 = vpow.pop %v706
        %v708 = vmul.f32 %v699, 0.0
        %v709 = vmul.f32 %v701, 0.0
        %v710 = vsel %vm594, %v705, 0.0
        %711 = vadd.xlane.f32.xlu0 %v710
        %v712 = vpop.xlane.xlu0 %711
        %v713 = vsel %vm594, %v707, 0.0
        %714 = vadd.xlane.f32.xlu0 %v713
        %v715 = vpop.xlane.xlu0 %714
        %v716 = vadd.f32 %v708, %v712
        %v717 = vadd.f32 %v709, %v715
        %v718 = vpack.c.bf16 %v705, %v705
        %v719 = vpack.c.bf16 %v707, %v707
        %720 = vrot.lane.b32.xlu0 %v577, 64
        %v721 = vpop.permute.xlu0 %720
        %v723 = vsel %vm594, %v718, 0
        %vm725 = vcmask 1043456
        %v727 = vsel %vm725, %v721, 0
        %729 = vmatprep.subr.bf16.mxu0 0
        %730 = vmatpush1.bf16.msra.mxu0 %v727
        %731 = vmatprep.subr.bf16.mxu0 0
        %732 = vmatpush1.bf16.msra.mxu0 0
        %733 = vmatprep.subr.bf16.mxu0 0
        %734 = vmatpush1.bf16.msra.mxu0 0
        %735 = vmatprep.subr.bf16.mxu0 0
        %736 = vmatpush1.bf16.msra.mxu0 0
        %737 = vmatprep.subr.bf16.mxu0 0
        %738 = vmatpush1.bf16.msra.mxu0 0
        %739 = vmatprep.subr.bf16.mxu0 0
        %740 = vmatpush1.bf16.msra.mxu0 0
        %741 = vmatprep.subr.bf16.mxu0 0
        %742 = vmatpush1.bf16.msra.mxu0 0
        %743 = vmatprep.subr.bf16.mxu0 0
        %744 = vmatpush1.bf16.msra.mxu0 0
        %745 = vmatprep.subr.bf16.mxu0 0
        %746 = vmatpush1.bf16.msra.mxu0 0
        %747 = vmatprep.subr.bf16.mxu0 0
        %748 = vmatpush1.bf16.msra.mxu0 0
        %749 = vmatprep.subr.bf16.mxu0 0
        %750 = vmatpush1.bf16.msra.mxu0 0
        %751 = vmatprep.subr.bf16.mxu0 0
        %752 = vmatpush1.bf16.msra.mxu0 0
        %753 = vmatprep.subr.bf16.mxu0 0
        %754 = vmatpush1.bf16.msra.mxu0 0
        %755 = vmatprep.subr.bf16.mxu0 0
        %756 = vmatpush1.bf16.msra.mxu0 0
        %757 = vmatprep.subr.bf16.mxu0 0
        %758 = vmatpush1.bf16.msra.mxu0 0
        %759 = vmatprep.subr.bf16.mxu0 0
        %760 = vmatpush1.bf16.msra.mxu0 0
        %761 = vmatprep.mubr.bf16.mxu0 0
        %762 = vmatmul.mubr.bf16.gmra.mrb[0].mxu0 %v723
        %v763 = vpop.f32.mrb[0].mxu0
        %v764 = vadd.f32 0.0, %v763
        %v765 = vpop.f32.mrb[0].mxu0
        %v766 = vpop.f32.mrb[0].mxu0
        %v767 = vpop.f32.mrb[0].mxu0
        %768 = vdwg.mxu0
        %769 = vrot.lane.b32.xlu0 %v578, 64
        %v770 = vpop.permute.xlu0 %769
        %v772 = vsel %vm594, %v719, 0
        %v775 = vsel %vm725, %v770, 0
        %777 = vmatprep.subr.bf16.mxu0 0
        %778 = vmatpush1.bf16.msra.mxu0 %v775
        %779 = vmatprep.subr.bf16.mxu0 0
        %780 = vmatpush1.bf16.msra.mxu0 0
        %781 = vmatprep.subr.bf16.mxu0 0
        %782 = vmatpush1.bf16.msra.mxu0 0
        %783 = vmatprep.subr.bf16.mxu0 0
        %784 = vmatpush1.bf16.msra.mxu0 0
        %785 = vmatprep.subr.bf16.mxu0 0
        %786 = vmatpush1.bf16.msra.mxu0 0
        %787 = vmatprep.subr.bf16.mxu0 0
        %788 = vmatpush1.bf16.msra.mxu0 0
        %789 = vmatprep.subr.bf16.mxu0 0
        %790 = vmatpush1.bf16.msra.mxu0 0
        %791 = vmatprep.subr.bf16.mxu0 0
        %792 = vmatpush1.bf16.msra.mxu0 0
        %793 = vmatprep.subr.bf16.mxu0 0
        %794 = vmatpush1.bf16.msra.mxu0 0
        %795 = vmatprep.subr.bf16.mxu0 0
        %796 = vmatpush1.bf16.msra.mxu0 0
        %797 = vmatprep.subr.bf16.mxu0 0
        %798 = vmatpush1.bf16.msra.mxu0 0
        %799 = vmatprep.subr.bf16.mxu0 0
        %800 = vmatpush1.bf16.msra.mxu0 0
        %801 = vmatprep.subr.bf16.mxu0 0
        %802 = vmatpush1.bf16.msra.mxu0 0
        %803 = vmatprep.subr.bf16.mxu0 0
        %804 = vmatpush1.bf16.msra.mxu0 0
        %805 = vmatprep.subr.bf16.mxu0 0
        %806 = vmatpush1.bf16.msra.mxu0 0
        %807 = vmatprep.subr.bf16.mxu0 0
        %808 = vmatpush1.bf16.msra.mxu0 0
        %809 = vmatprep.mubr.bf16.mxu0 0
        %810 = vmatmul.mubr.bf16.gmra.mrb[0].mxu0 %v772
        %v811 = vpop.f32.mrb[0].mxu0
        %v812 = vadd.f32 0.0, %v811
        %v813 = vpop.f32.mrb[0].mxu0
        %v814 = vpop.f32.mrb[0].mxu0
        %v815 = vpop.f32.mrb[0].mxu0
        %816 = vdwg.mxu0
        %v817 = vadd.f32 %v708, %v764
        %v818 = vadd.f32 %v709, %v812
        %v819 = vrcp.pop %v716
        %v820 = vrcp.pop %v717
        %v821 = vmul.f32 %v817, %v819
        %v822 = vmul.f32 %v818, %v820
        %v823 = vpack.c.bf16 %v822, %v821
        %v824 = vld [vmem:[%s464] sm:$0xf]
        %826 = vrot.lane.b32.xlu0 %v575, 120
        %v827 = vpop.permute.xlu0 %826
        %828 = vrot.lane.b32.xlu0 %v577, 88
        %v829 = vpop.permute.xlu0 %828
        %v831 = vsel %vm594, %v827, 0
        %v834 = vsel %vm594, %v829, 0
        %836 = vmatprep.subr.bf16.mxu0 0
        %837 = vmatpush1.bf16.xpose.msra.mxu0 %v834
        %838 = vmatprep.subr.bf16.mxu0 0
        %839 = vmatpush1.bf16.xpose.msra.mxu0 0
        %840 = vmatprep.subr.bf16.mxu0 0
        %841 = vmatpush1.bf16.xpose.msra.mxu0 0
        %842 = vmatprep.subr.bf16.mxu0 0
        %843 = vmatpush1.bf16.xpose.msra.mxu0 0
        %844 = vmatprep.subr.bf16.mxu0 0
        %845 = vmatpush1.bf16.xpose.msra.mxu0 0
        %846 = vmatprep.subr.bf16.mxu0 0
        %847 = vmatpush1.bf16.xpose.msra.mxu0 0
        %848 = vmatprep.subr.bf16.mxu0 0
        %849 = vmatpush1.bf16.xpose.msra.mxu0 0
        %850 = vmatprep.subr.bf16.mxu0 0
        %851 = vmatpush1.bf16.xpose.msra.mxu0 0
        %852 = vmatprep.subr.bf16.mxu0 0
        %853 = vmatpush1.bf16.xpose.msra.mxu0 0
        %854 = vmatprep.subr.bf16.mxu0 0
        %855 = vmatpush1.bf16.xpose.msra.mxu0 0
        %856 = vmatprep.subr.bf16.mxu0 0
        %857 = vmatpush1.bf16.xpose.msra.mxu0 0
        %858 = vmatprep.subr.bf16.mxu0 0
        %859 = vmatpush1.bf16.xpose.msra.mxu0 0
        %860 = vmatprep.subr.bf16.mxu0 0
        %861 = vmatpush1.bf16.xpose.msra.mxu0 0
        %862 = vmatprep.subr.bf16.mxu0 0
        %863 = vmatpush1.bf16.xpose.msra.mxu0 0
        %864 = vmatprep.subr.bf16.mxu0 0
        %865 = vmatpush1.bf16.xpose.msra.mxu0 0
        %866 = vmatprep.subr.bf16.mxu0 0
        %867 = vmatpush1.bf16.xpose.msra.mxu0 0
        %868 = vmatprep.mubr.bf16.mxu0 0
        %869 = vmatmul.mubr.bf16.gmra.mrb[0].mxu0 %v831
        %v870 = vpop.f32.mrb[0].mxu0
        %v871 = vadd.f32 %v584, %v870
        %v872 = vpop.f32.mrb[0].mxu0
        %v873 = vpop.f32.mrb[0].mxu0
        %v874 = vpop.f32.mrb[0].mxu0
        %875 = vdwg.mxu0
        %877 = vrot.lane.b32.xlu0 %v576, 120
        %v878 = vpop.permute.xlu0 %877
        %879 = vrot.lane.b32.xlu0 %v578, 88
        %v880 = vpop.permute.xlu0 %879
        %v882 = vsel %vm594, %v878, 0
        %v885 = vsel %vm594, %v880, 0
        %887 = vmatprep.subr.bf16.mxu0 0
        %888 = vmatpush1.bf16.xpose.msra.mxu0 %v885
        %889 = vmatprep.subr.bf16.mxu0 0
        %890 = vmatpush1.bf16.xpose.msra.mxu0 0
        %891 = vmatprep.subr.bf16.mxu0 0
        %892 = vmatpush1.bf16.xpose.msra.mxu0 0
        %893 = vmatprep.subr.bf16.mxu0 0
        %894 = vmatpush1.bf16.xpose.msra.mxu0 0
        %895 = vmatprep.subr.bf16.mxu0 0
        %896 = vmatpush1.bf16.xpose.msra.mxu0 0
        %897 = vmatprep.subr.bf16.mxu0 0
        %898 = vmatpush1.bf16.xpose.msra.mxu0 0
        %899 = vmatprep.subr.bf16.mxu0 0
        %900 = vmatpush1.bf16.xpose.msra.mxu0 0
        %901 = vmatprep.subr.bf16.mxu0 0
        %902 = vmatpush1.bf16.xpose.msra.mxu0 0
        %903 = vmatprep.subr.bf16.mxu0 0
        %904 = vmatpush1.bf16.xpose.msra.mxu0 0
        %905 = vmatprep.subr.bf16.mxu0 0
        %906 = vmatpush1.bf16.xpose.msra.mxu0 0
        %907 = vmatprep.subr.bf16.mxu0 0
        %908 = vmatpush1.bf16.xpose.msra.mxu0 0
        %909 = vmatprep.subr.bf16.mxu0 0
        %910 = vmatpush1.bf16.xpose.msra.mxu0 0
        %911 = vmatprep.subr.bf16.mxu0 0
        %912 = vmatpush1.bf16.xpose.msra.mxu0 0
        %913 = vmatprep.subr.bf16.mxu0 0
        %914 = vmatpush1.bf16.xpose.msra.mxu0 0
        %915 = vmatprep.subr.bf16.mxu0 0
        %916 = vmatpush1.bf16.xpose.msra.mxu0 0
        %917 = vmatprep.subr.bf16.mxu0 0
        %918 = vmatpush1.bf16.xpose.msra.mxu0 0
        %919 = vmatprep.mubr.bf16.mxu0 0
        %920 = vmatmul.mubr.bf16.gmra.mrb[0].mxu0 %v882
        %v921 = vpop.f32.mrb[0].mxu0
        %v922 = vadd.f32 %v588, %v921
        %v923 = vpop.f32.mrb[0].mxu0
        %v924 = vpop.f32.mrb[0].mxu0
        %v925 = vpop.f32.mrb[0].mxu0
        %926 = vdwg.mxu0
        %v927 = vsel %vm594, %v871, -inf
        %928 = vmax.xlane.f32.xlu0 %v927
        %v929 = vpop.xlane.xlu0 %928
        %v930 = vsel %vm594, %v922, -inf
        %931 = vmax.xlane.f32.xlu0 %v930
        %v932 = vpop.xlane.xlu0 %931
        %v933 = vsub.f32 -inf, %v929
        %v934 = vsub.f32 -inf, %v932
        %v935 = vmul.f32 %v933, 1.442695
        %v936 = vpow.pop %v935
        %v937 = vmul.f32 %v934, 1.442695
        %v938 = vpow.pop %v937
        %v939 = vsub.f32 %v871, %v929
        %v940 = vsub.f32 %v922, %v932
        %v941 = vmul.f32 %v939, 1.442695
        %v942 = vpow.pop %v941
        %v943 = vmul.f32 %v940, 1.442695
        %v944 = vpow.pop %v943
        %v945 = vmul.f32 %v936, 0.0
        %v946 = vmul.f32 %v938, 0.0
        %v947 = vsel %vm594, %v942, 0.0
        %948 = vadd.xlane.f32.xlu0 %v947
        %v949 = vpop.xlane.xlu0 %948
        %v950 = vsel %vm594, %v944, 0.0
        %951 = vadd.xlane.f32.xlu0 %v950
        %v952 = vpop.xlane.xlu0 %951
        %v953 = vadd.f32 %v945, %v949
        %v954 = vadd.f32 %v946, %v952
        %v955 = vpack.c.bf16 %v942, %v942
        %v956 = vpack.c.bf16 %v944, %v944
        %957 = vrot.lane.b32.xlu0 %v577, 56
        %v958 = vpop.permute.xlu0 %957
        %v960 = vsel %vm594, %v955, 0
        %v963 = vsel %vm725, %v958, 0
        %965 = vmatprep.subr.bf16.mxu0 0
        %966 = vmatpush1.bf16.msra.mxu0 %v963
        %967 = vmatprep.subr.bf16.mxu0 0
        %968 = vmatpush1.bf16.msra.mxu0 0
        %969 = vmatprep.subr.bf16.mxu0 0
        %970 = vmatpush1.bf16.msra.mxu0 0
        %971 = vmatprep.subr.bf16.mxu0 0
        %972 = vmatpush1.bf16.msra.mxu0 0
        %973 = vmatprep.subr.bf16.mxu0 0
        %974 = vmatpush1.bf16.msra.mxu0 0
        %975 = vmatprep.subr.bf16.mxu0 0
        %976 = vmatpush1.bf16.msra.mxu0 0
        %977 = vmatprep.subr.bf16.mxu0 0
        %978 = vmatpush1.bf16.msra.mxu0 0
        %979 = vmatprep.subr.bf16.mxu0 0
        %980 = vmatpush1.bf16.msra.mxu0 0
        %981 = vmatprep.subr.bf16.mxu0 0
        %982 = vmatpush1.bf16.msra.mxu0 0
        %983 = vmatprep.subr.bf16.mxu0 0
        %984 = vmatpush1.bf16.msra.mxu0 0
        %985 = vmatprep.subr.bf16.mxu0 0
        %986 = vmatpush1.bf16.msra.mxu0 0
        %987 = vmatprep.subr.bf16.mxu0 0
        %988 = vmatpush1.bf16.msra.mxu0 0
        %989 = vmatprep.subr.bf16.mxu0 0
        %990 = vmatpush1.bf16.msra.mxu0 0
        %991 = vmatprep.subr.bf16.mxu0 0
        %992 = vmatpush1.bf16.msra.mxu0 0
        %993 = vmatprep.subr.bf16.mxu0 0
        %994 = vmatpush1.bf16.msra.mxu0 0
        %995 = vmatprep.subr.bf16.mxu0 0
        %996 = vmatpush1.bf16.msra.mxu0 0
        %997 = vmatprep.mubr.bf16.mxu0 0
        %998 = vmatmul.mubr.bf16.gmra.mrb[0].mxu0 %v960
        %v999 = vpop.f32.mrb[0].mxu0
        %v1000 = vadd.f32 0.0, %v999
        %v1001 = vpop.f32.mrb[0].mxu0
        %v1002 = vpop.f32.mrb[0].mxu0
        %v1003 = vpop.f32.mrb[0].mxu0
        %1004 = vdwg.mxu0
        %1005 = vrot.lane.b32.xlu0 %v578, 56
        %v1006 = vpop.permute.xlu0 %1005
        %v1008 = vsel %vm594, %v956, 0
        %v1011 = vsel %vm725, %v1006, 0
        %1013 = vmatprep.subr.bf16.mxu0 0
        %1014 = vmatpush1.bf16.msra.mxu0 %v1011
        %1015 = vmatprep.subr.bf16.mxu0 0
        %1016 = vmatpush1.bf16.msra.mxu0 0
        %1017 = vmatprep.subr.bf16.mxu0 0
        %1018 = vmatpush1.bf16.msra.mxu0 0
        %1019 = vmatprep.subr.bf16.mxu0 0
        %1020 = vmatpush1.bf16.msra.mxu0 0
        %1021 = vmatprep.subr.bf16.mxu0 0
        %1022 = vmatpush1.bf16.msra.mxu0 0
        %1023 = vmatprep.subr.bf16.mxu0 0
        %1024 = vmatpush1.bf16.msra.mxu0 0
        %1025 = vmatprep.subr.bf16.mxu0 0
        %1026 = vmatpush1.bf16.msra.mxu0 0
        %1027 = vmatprep.subr.bf16.mxu0 0
        %1028 = vmatpush1.bf16.msra.mxu0 0
        %1029 = vmatprep.subr.bf16.mxu0 0
        %1030 = vmatpush1.bf16.msra.mxu0 0
        %1031 = vmatprep.subr.bf16.mxu0 0
        %1032 = vmatpush1.bf16.msra.mxu0 0
        %1033 = vmatprep.subr.bf16.mxu0 0
        %1034 = vmatpush1.bf16.msra.mxu0 0
        %1035 = vmatprep.subr.bf16.mxu0 0
        %1036 = vmatpush1.bf16.msra.mxu0 0
        %1037 = vmatprep.subr.bf16.mxu0 0
        %1038 = vmatpush1.bf16.msra.mxu0 0
        %1039 = vmatprep.subr.bf16.mxu0 0
        %1040 = vmatpush1.bf16.msra.mxu0 0
        %1041 = vmatprep.subr.bf16.mxu0 0
        %1042 = vmatpush1.bf16.msra.mxu0 0
        %1043 = vmatprep.subr.bf16.mxu0 0
        %1044 = vmatpush1.bf16.msra.mxu0 0
        %1045 = vmatprep.mubr.bf16.mxu0 0
        %1046 = vmatmul.mubr.bf16.gmra.mrb[0].mxu0 %v1008
        %v1047 = vpop.f32.mrb[0].mxu0
        %v1048 = vadd.f32 0.0, %v1047
        %v1049 = vpop.f32.mrb[0].mxu0
        %v1050 = vpop.f32.mrb[0].mxu0
        %v1051 = vpop.f32.mrb[0].mxu0
        %1052 = vdwg.mxu0
        %v1053 = vadd.f32 %v945, %v1000
        %v1054 = vadd.f32 %v946, %v1048
        %v1055 = vrcp.pop %v953
        %v1056 = vrcp.pop %v954
        %v1057 = vmul.f32 %v1053, %v1055
        %v1058 = vmul.f32 %v1054, %v1056
        %v1059 = vpack.c.bf16 %v1058, %v1057
        %v1060 = vld [vmem:[%s464 + $0x4] sm:$0xf]
        %v1062 = vsel %vm594, %v1059, 0
        %v1065 = vsel %vm725, %v1060, 0
        %1067 = vmatprep.subr.bf16.mxu0 0
        %1068 = vmatpush1.bf16.msra.mxu0 %v1065
        %1069 = vmatprep.subr.bf16.mxu0 0
        %1070 = vmatpush1.bf16.msra.mxu0 0
        %1071 = vmatprep.subr.bf16.mxu0 0
        %1072 = vmatpush1.bf16.msra.mxu0 0
        %1073 = vmatprep.subr.bf16.mxu0 0
        %1074 = vmatpush1.bf16.msra.mxu0 0
        %1075 = vmatprep.subr.bf16.mxu0 0
        %1076 = vmatpush1.bf16.msra.mxu0 0
        %1077 = vmatprep.subr.bf16.mxu0 0
        %1078 = vmatpush1.bf16.msra.mxu0 0
        %1079 = vmatprep.subr.bf16.mxu0 0
        %1080 = vmatpush1.bf16.msra.mxu0 0
        %1081 = vmatprep.subr.bf16.mxu0 0
        %1082 = vmatpush1.bf16.msra.mxu0 0
        %1083 = vmatprep.subr.bf16.mxu0 0
        %1084 = vmatpush1.bf16.msra.mxu0 0
        %1085 = vmatprep.subr.bf16.mxu0 0
        %1086 = vmatpush1.bf16.msra.mxu0 0
        %1087 = vmatprep.subr.bf16.mxu0 0
        %1088 = vmatpush1.bf16.msra.mxu0 0
        %1089 = vmatprep.subr.bf16.mxu0 0
        %1090 = vmatpush1.bf16.msra.mxu0 0
        %1091 = vmatprep.subr.bf16.mxu0 0
        %1092 = vmatpush1.bf16.msra.mxu0 0
        %1093 = vmatprep.subr.bf16.mxu0 0
        %1094 = vmatpush1.bf16.msra.mxu0 0
        %1095 = vmatprep.subr.bf16.mxu0 0
        %1096 = vmatpush1.bf16.msra.mxu0 0
        %1097 = vmatprep.subr.bf16.mxu0 0
        %1098 = vmatpush1.bf16.msra.mxu0 0
        %1099 = vmatprep.mubr.bf16.mxu0 0
        %1100 = vmatmul.mubr.bf16.gmra.mrb[0].mxu0 %v1062
        %v1101 = vpop.f32.mrb[0].mxu0
        %v1102 = vadd.f32 0.0, %v1101
        %v1103 = vpop.f32.mrb[0].mxu0
        %v1104 = vpop.f32.mrb[0].mxu0
        %v1105 = vadd.f32 0.0, %v1104
        %v1106 = vpop.f32.mrb[0].mxu0
        %1107 = vdwg.mxu0
        %v1109 = vsel %vm594, %v823, 0
        %v1112 = vsel %vm725, %v824, 0
        %1114 = vmatprep.subr.bf16.mxu0 0
        %1115 = vmatpush1.bf16.msra.mxu0 %v1112
        %1116 = vmatprep.subr.bf16.mxu0 0
        %1117 = vmatpush1.bf16.msra.mxu0 0
        %1118 = vmatprep.subr.bf16.mxu0 0
        %1119 = vmatpush1.bf16.msra.mxu0 0
        %1120 = vmatprep.subr.bf16.mxu0 0
        %1121 = vmatpush1.bf16.msra.mxu0 0
        %1122 = vmatprep.subr.bf16.mxu0 0
        %1123 = vmatpush1.bf16.msra.mxu0 0
        %1124 = vmatprep.subr.bf16.mxu0 0
        %1125 = vmatpush1.bf16.msra.mxu0 0
        %1126 = vmatprep.subr.bf16.mxu0 0
        %1127 = vmatpush1.bf16.msra.mxu0 0
        %1128 = vmatprep.subr.bf16.mxu0 0
        %1129 = vmatpush1.bf16.msra.mxu0 0
        %1130 = vmatprep.subr.bf16.mxu0 0
        %1131 = vmatpush1.bf16.msra.mxu0 0
        %1132 = vmatprep.subr.bf16.mxu0 0
        %1133 = vmatpush1.bf16.msra.mxu0 0
        %1134 = vmatprep.subr.bf16.mxu0 0
        %1135 = vmatpush1.bf16.msra.mxu0 0
        %1136 = vmatprep.subr.bf16.mxu0 0
        %1137 = vmatpush1.bf16.msra.mxu0 0
        %1138 = vmatprep.subr.bf16.mxu0 0
        %1139 = vmatpush1.bf16.msra.mxu0 0
        %1140 = vmatprep.subr.bf16.mxu0 0
        %1141 = vmatpush1.bf16.msra.mxu0 0
        %1142 = vmatprep.subr.bf16.mxu0 0
        %1143 = vmatpush1.bf16.msra.mxu0 0
        %1144 = vmatprep.subr.bf16.mxu0 0
        %1145 = vmatpush1.bf16.msra.mxu0 0
        %1146 = vmatprep.mubr.bf16.mxu0 0
        %1147 = vmatmul.mubr.bf16.gmra.mrb[0].mxu0 %v1109
        %v1148 = vpop.f32.mrb[0].mxu0
        %v1149 = vadd.f32 %v1102, %v1148
        %v1150 = vpop.f32.mrb[0].mxu0
        %v1151 = vpop.f32.mrb[0].mxu0
        %v1152 = vadd.f32 %v1105, %v1151
        %v1153 = vpop.f32.mrb[0].mxu0
        %1154 = vdwg.mxu0
        %1155 = vrot.lane.b32.xlu0 %v575, 112
        %v1156 = vpop.permute.xlu0 %1155
        %1157 = vrot.lane.b32.xlu0 %v577, 80
        %v1158 = vpop.permute.xlu0 %1157
        %v1160 = vsel %vm594, %v1156, 0
        %v1163 = vsel %vm594, %v1158, 0
        %1165 = vmatprep.subr.bf16.mxu0 0
        %1166 = vmatpush1.bf16.xpose.msra.mxu0 %v1163
        %1167 = vmatprep.subr.bf16.mxu0 0
        %1168 = vmatpush1.bf16.xpose.msra.mxu0 0
        %1169 = vmatprep.subr.bf16.mxu0 0
        %1170 = vmatpush1.bf16.xpose.msra.mxu0 0
        %1171 = vmatprep.subr.bf16.mxu0 0
        %1172 = vmatpush1.bf16.xpose.msra.mxu0 0
        %1173 = vmatprep.subr.bf16.mxu0 0
        %1174 = vmatpush1.bf16.xpose.msra.mxu0 0
        %1175 = vmatprep.subr.bf16.mxu0 0
        %1176 = vmatpush1.bf16.xpose.msra.mxu0 0
        %1177 = vmatprep.subr.bf16.mxu0 0
        %1178 = vmatpush1.bf16.xpose.msra.mxu0 0
        %1179 = vmatprep.subr.bf16.mxu0 0
        %1180 = vmatpush1.bf16.xpose.msra.mxu0 0
        %1181 = vmatprep.subr.bf16.mxu0 0
        %1182 = vmatpush1.bf16.xpose.msra.mxu0 0
        %1183 = vmatprep.subr.bf16.mxu0 0
        %1184 = vmatpush1.bf16.xpose.msra.mxu0 0
        %1185 = vmatprep.subr.bf16.mxu0 0
        %1186 = vmatpush1.bf16.xpose.msra.mxu0 0
        %1187 = vmatprep.subr.bf16.mxu0 0
        %1188 = vmatpush1.bf16.xpose.msra.mxu0 0
        %1189 = vmatprep.subr.bf16.mxu0 0
        %1190 = vmatpush1.bf16.xpose.msra.mxu0 0
        %1191 = vmatprep.subr.bf16.mxu0 0
        %1192 = vmatpush1.bf16.xpose.msra.mxu0 0
        %1193 = vmatprep.subr.bf16.mxu0 0
        %1194 = vmatpush1.bf16.xpose.msra.mxu0 0
        %1195 = vmatprep.subr.bf16.mxu0 0
        %1196 = vmatpush1.bf16.xpose.msra.mxu0 0
        %1197 = vmatprep.mubr.bf16.mxu0 0
        %1198 = vmatmul.mubr.bf16.gmra.mrb[0].mxu0 %v1160
        %v1199 = vpop.f32.mrb[0].mxu0
        %v1200 = vadd.f32 %v584, %v1199
        %v1201 = vpop.f32.mrb[0].mxu0
        %v1202 = vpop.f32.mrb[0].mxu0
        %v1203 = vpop.f32.mrb[0].mxu0
        %1204 = vdwg.mxu0
        %1205 = vrot.lane.b32.xlu0 %v576, 112
        %v1206 = vpop.permute.xlu0 %1205
        %1207 = vrot.lane.b32.xlu0 %v578, 80
        %v1208 = vpop.permute.xlu0 %1207
        %v1210 = vsel %vm594, %v1206, 0
        %v1213 = vsel %vm594, %v1208, 0
        %1215 = vmatprep.subr.bf16.mxu0 0
        %1216 = vmatpush1.bf16.xpose.msra.mxu0 %v1213
        %1217 = vmatprep.subr.bf16.mxu0 0
        %1218 = vmatpush1.bf16.xpose.msra.mxu0 0
        %1219 = vmatprep.subr.bf16.mxu0 0
        %1220 = vmatpush1.bf16.xpose.msra.mxu0 0
        %1221 = vmatprep.subr.bf16.mxu0 0
        %1222 = vmatpush1.bf16.xpose.msra.mxu0 0
        %1223 = vmatprep.subr.bf16.mxu0 0
        %1224 = vmatpush1.bf16.xpose.msra.mxu0 0
        %1225 = vmatprep.subr.bf16.mxu0 0
        %1226 = vmatpush1.bf16.xpose.msra.mxu0 0
        %1227 = vmatprep.subr.bf16.mxu0 0
        %1228 = vmatpush1.bf16.xpose.msra.mxu0 0
        %1229 = vmatprep.subr.bf16.mxu0 0
        %1230 = vmatpush1.bf16.xpose.msra.mxu0 0
        %1231 = vmatprep.subr.bf16.mxu0 0
        %1232 = vmatpush1.bf16.xpose.msra.mxu0 0
        %1233 = vmatprep.subr.bf16.mxu0 0
        %1234 = vmatpush1.bf16.xpose.msra.mxu0 0
        %1235 = vmatprep.subr.bf16.mxu0 0
        %1236 = vmatpush1.bf16.xpose.msra.mxu0 0
        %1237 = vmatprep.subr.bf16.mxu0 0
        %1238 = vmatpush1.bf16.xpose.msra.mxu0 0
        %1239 = vmatprep.subr.bf16.mxu0 0
        %1240 = vmatpush1.bf16.xpose.msra.mxu0 0
        %1241 = vmatprep.subr.bf16.mxu0 0
        %1242 = vmatpush1.bf16.xpose.msra.mxu0 0
        %1243 = vmatprep.subr.bf16.mxu0 0
        %1244 = vmatpush1.bf16.xpose.msra.mxu0 0
        %1245 = vmatprep.subr.bf16.mxu0 0
        %1246 = vmatpush1.bf16.xpose.msra.mxu0 0
        %1247 = vmatprep.mubr.bf16.mxu0 0
        %1248 = vmatmul.mubr.bf16.gmra.mrb[0].mxu0 %v1210
        %v1249 = vpop.f32.mrb[0].mxu0
        %v1250 = vadd.f32 %v588, %v1249
        %v1251 = vpop.f32.mrb[0].mxu0
        %v1252 = vpop.f32.mrb[0].mxu0
        %v1253 = vpop.f32.mrb[0].mxu0
        %1254 = vdwg.mxu0
        %v1255 = vsel %vm594, %v1200, -inf
        %1256 = vmax.xlane.f32.xlu0 %v1255
        %v1257 = vpop.xlane.xlu0 %1256
        %v1258 = vsel %vm594, %v1250, -inf
        %1259 = vmax.xlane.f32.xlu0 %v1258
        %v1260 = vpop.xlane.xlu0 %1259
        %v1261 = vsub.f32 -inf, %v1257
        %v1262 = vsub.f32 -inf, %v1260
        %v1263 = vmul.f32 %v1261, 1.442695
        %v1264 = vpow.pop %v1263
        %v1265 = vmul.f32 %v1262, 1.442695
        %v1266 = vpow.pop %v1265
        %v1267 = vsub.f32 %v1200, %v1257
        %v1268 = vsub.f32 %v1250, %v1260
        %v1269 = vmul.f32 %v1267, 1.442695
        %v1270 = vpow.pop %v1269
        %v1271 = vmul.f32 %v1268, 1.442695
        %v1272 = vpow.pop %v1271
        %v1273 = vmul.f32 %v1264, 0.0
        %v1274 = vmul.f32 %v1266, 0.0
        %v1275 = vsel %vm594, %v1270, 0.0
        %1276 = vadd.xlane.f32.xlu0 %v1275
        %v1277 = vpop.xlane.xlu0 %1276
        %v1278 = vsel %vm594, %v1272, 0.0
        %1279 = vadd.xlane.f32.xlu0 %v1278
        %v1280 = vpop.xlane.xlu0 %1279
        %v1281 = vadd.f32 %v1273, %v1277
        %v1282 = vadd.f32 %v1274, %v1280
        %v1283 = vpack.c.bf16 %v1270, %v1270
        %v1284 = vpack.c.bf16 %v1272, %v1272
        %1285 = vrot.lane.b32.xlu0 %v577, 48
        %v1286 = vpop.permute.xlu0 %1285
        %v1288 = vsel %vm594, %v1283, 0
        %v1291 = vsel %vm725, %v1286, 0
        %1293 = vmatprep.subr.bf16.mxu0 0
        %1294 = vmatpush1.bf16.msra.mxu0 %v1291
        %1295 = vmatprep.subr.bf16.mxu0 0
        %1296 = vmatpush1.bf16.msra.mxu0 0
        %1297 = vmatprep.subr.bf16.mxu0 0
        %1298 = vmatpush1.bf16.msra.mxu0 0
        %1299 = vmatprep.subr.bf16.mxu0 0
        %1300 = vmatpush1.bf16.msra.mxu0 0
        %1301 = vmatprep.subr.bf16.mxu0 0
        %1302 = vmatpush1.bf16.msra.mxu0 0
        %1303 = vmatprep.subr.bf16.mxu0 0
        %1304 = vmatpush1.bf16.msra.mxu0 0
        %1305 = vmatprep.subr.bf16.mxu0 0
        %1306 = vmatpush1.bf16.msra.mxu0 0
        %1307 = vmatprep.subr.bf16.mxu0 0
        %1308 = vmatpush1.bf16.msra.mxu0 0
        %1309 = vmatprep.subr.bf16.mxu0 0
        %1310 = vmatpush1.bf16.msra.mxu0 0
        %1311 = vmatprep.subr.bf16.mxu0 0
        %1312 = vmatpush1.bf16.msra.mxu0 0
        %1313 = vmatprep.subr.bf16.mxu0 0
        %1314 = vmatpush1.bf16.msra.mxu0 0
        %1315 = vmatprep.subr.bf16.mxu0 0
        %1316 = vmatpush1.bf16.msra.mxu0 0
        %1317 = vmatprep.subr.bf16.mxu0 0
        %1318 = vmatpush1.bf16.msra.mxu0 0
        %1319 = vmatprep.subr.bf16.mxu0 0
        %1320 = vmatpush1.bf16.msra.mxu0 0
        %1321 = vmatprep.subr.bf16.mxu0 0
        %1322 = vmatpush1.bf16.msra.mxu0 0
        %1323 = vmatprep.subr.bf16.mxu0 0
        %1324 = vmatpush1.bf16.msra.mxu0 0
        %1325 = vmatprep.mubr.bf16.mxu0 0
        %1326 = vmatmul.mubr.bf16.gmra.mrb[0].mxu0 %v1288
        %v1327 = vpop.f32.mrb[0].mxu0
        %v1328 = vadd.f32 0.0, %v1327
        %v1329 = vpop.f32.mrb[0].mxu0
        %v1330 = vpop.f32.mrb[0].mxu0
        %v1331 = vpop.f32.mrb[0].mxu0
        %1332 = vdwg.mxu0
        %1333 = vrot.lane.b32.xlu0 %v578, 48
        %v1334 = vpop.permute.xlu0 %1333
        %v1336 = vsel %vm594, %v1284, 0
        %v1339 = vsel %vm725, %v1334, 0
        %1341 = vmatprep.subr.bf16.mxu0 0
        %1342 = vmatpush1.bf16.msra.mxu0 %v1339
        %1343 = vmatprep.subr.bf16.mxu0 0
        %1344 = vmatpush1.bf16.msra.mxu0 0
        %1345 = vmatprep.subr.bf16.mxu0 0
        %1346 = vmatpush1.bf16.msra.mxu0 0
        %1347 = vmatprep.subr.bf16.mxu0 0
        %1348 = vmatpush1.bf16.msra.mxu0 0
        %1349 = vmatprep.subr.bf16.mxu0 0
        %1350 = vmatpush1.bf16.msra.mxu0 0
        %1351 = vmatprep.subr.bf16.mxu0 0
        %1352 = vmatpush1.bf16.msra.mxu0 0
        %1353 = vmatprep.subr.bf16.mxu0 0
        %1354 = vmatpush1.bf16.msra.mxu0 0
        %1355 = vmatprep.subr.bf16.mxu0 0
        %1356 = vmatpush1.bf16.msra.mxu0 0
        %1357 = vmatprep.subr.bf16.mxu0 0
        %1358 = vmatpush1.bf16.msra.mxu0 0
        %1359 = vmatprep.subr.bf16.mxu0 0
        %1360 = vmatpush1.bf16.msra.mxu0 0
        %1361 = vmatprep.subr.bf16.mxu0 0
        %1362 = vmatpush1.bf16.msra.mxu0 0
        %1363 = vmatprep.subr.bf16.mxu0 0
        %1364 = vmatpush1.bf16.msra.mxu0 0
        %1365 = vmatprep.subr.bf16.mxu0 0
        %1366 = vmatpush1.bf16.msra.mxu0 0
        %1367 = vmatprep.subr.bf16.mxu0 0
        %1368 = vmatpush1.bf16.msra.mxu0 0
        %1369 = vmatprep.subr.bf16.mxu0 0
        %1370 = vmatpush1.bf16.msra.mxu0 0
        %1371 = vmatprep.subr.bf16.mxu0 0
        %1372 = vmatpush1.bf16.msra.mxu0 0
        %1373 = vmatprep.mubr.bf16.mxu0 0
        %1374 = vmatmul.mubr.bf16.gmra.mrb[0].mxu0 %v1336
        %v1375 = vpop.f32.mrb[0].mxu0
        %v1376 = vadd.f32 0.0, %v1375
        %v1377 = vpop.f32.mrb[0].mxu0
        %v1378 = vpop.f32.mrb[0].mxu0
        %v1379 = vpop.f32.mrb[0].mxu0
        %1380 = vdwg.mxu0
        %v1381 = vadd.f32 %v1273, %v1328
        %v1382 = vadd.f32 %v1274, %v1376
        %v1383 = vrcp.pop %v1281
        %v1384 = vrcp.pop %v1282
        %v1385 = vmul.f32 %v1381, %v1383
        %v1386 = vmul.f32 %v1382, %v1384
        %v1387 = vpack.c.bf16 %v1386, %v1385
        %v1388 = vld [vmem:[%s464 + $0x8] sm:$0xf]
        %v1390 = vsel %vm594, %v1387, 0
        %v1393 = vsel %vm725, %v1388, 0
        %1395 = vmatprep.subr.bf16.mxu0 0
        %1396 = vmatpush1.bf16.msra.mxu0 %v1393
        %1397 = vmatprep.subr.bf16.mxu0 0
        %1398 = vmatpush1.bf16.msra.mxu0 0
        %1399 = vmatprep.subr.bf16.mxu0 0
        %1400 = vmatpush1.bf16.msra.mxu0 0
        %1401 = vmatprep.subr.bf16.mxu0 0
        %1402 = vmatpush1.bf16.msra.mxu0 0
        %1403 = vmatprep.subr.bf16.mxu0 0
        %1404 = vmatpush1.bf16.msra.mxu0 0
        %1405 = vmatprep.subr.bf16.mxu0 0
        %1406 = vmatpush1.bf16.msra.mxu0 0
        %1407 = vmatprep.subr.bf16.mxu0 0
        %1408 = vmatpush1.bf16.msra.mxu0 0
        %1409 = vmatprep.subr.bf16.mxu0 0
        %1410 = vmatpush1.bf16.msra.mxu0 0
        %1411 = vmatprep.subr.bf16.mxu0 0
        %1412 = vmatpush1.bf16.msra.mxu0 0
        %1413 = vmatprep.subr.bf16.mxu0 0
        %1414 = vmatpush1.bf16.msra.mxu0 0
        %1415 = vmatprep.subr.bf16.mxu0 0
        %1416 = vmatpush1.bf16.msra.mxu0 0
        %1417 = vmatprep.subr.bf16.mxu0 0
        %1418 = vmatpush1.bf16.msra.mxu0 0
        %1419 = vmatprep.subr.bf16.mxu0 0
        %1420 = vmatpush1.bf16.msra.mxu0 0
        %1421 = vmatprep.subr.bf16.mxu0 0
        %1422 = vmatpush1.bf16.msra.mxu0 0
        %1423 = vmatprep.subr.bf16.mxu0 0
        %1424 = vmatpush1.bf16.msra.mxu0 0
        %1425 = vmatprep.subr.bf16.mxu0 0
        %1426 = vmatpush1.bf16.msra.mxu0 0
        %1427 = vmatprep.mubr.bf16.mxu0 0
        %1428 = vmatmul.mubr.bf16.gmra.mrb[0].mxu0 %v1390
        %v1429 = vpop.f32.mrb[0].mxu0
        %v1430 = vadd.f32 0.0, %v1429
        %v1431 = vpop.f32.mrb[0].mxu0
        %v1432 = vpop.f32.mrb[0].mxu0
        %v1433 = vadd.f32 0.0, %v1432
        %v1434 = vpop.f32.mrb[0].mxu0
        %1435 = vdwg.mxu0
        %v1436 = vadd.f32 %v1149, %v1430
        %v1437 = vadd.f32 %v1152, %v1433
        %1438 = vrot.lane.b32.xlu0 %v575, 104
        %v1439 = vpop.permute.xlu0 %1438
        %1440 = vrot.lane.b32.xlu0 %v577, 72
        %v1441 = vpop.permute.xlu0 %1440
        %v1443 = vsel %vm594, %v1439, 0
        %v1446 = vsel %vm594, %v1441, 0
        %1448 = vmatprep.subr.bf16.mxu0 0
        %1449 = vmatpush1.bf16.xpose.msra.mxu0 %v1446
        %1450 = vmatprep.subr.bf16.mxu0 0
        %1451 = vmatpush1.bf16.xpose.msra.mxu0 0
        %1452 = vmatprep.subr.bf16.mxu0 0
        %1453 = vmatpush1.bf16.xpose.msra.mxu0 0
        %1454 = vmatprep.subr.bf16.mxu0 0
        %1455 = vmatpush1.bf16.xpose.msra.mxu0 0
        %1456 = vmatprep.subr.bf16.mxu0 0
        %1457 = vmatpush1.bf16.xpose.msra.mxu0 0
        %1458 = vmatprep.subr.bf16.mxu0 0
        %1459 = vmatpush1.bf16.xpose.msra.mxu0 0
        %1460 = vmatprep.subr.bf16.mxu0 0
        %1461 = vmatpush1.bf16.xpose.msra.mxu0 0
        %1462 = vmatprep.subr.bf16.mxu0 0
        %1463 = vmatpush1.bf16.xpose.msra.mxu0 0
        %1464 = vmatprep.subr.bf16.mxu0 0
        %1465 = vmatpush1.bf16.xpose.msra.mxu0 0
        %1466 = vmatprep.subr.bf16.mxu0 0
        %1467 = vmatpush1.bf16.xpose.msra.mxu0 0
        %1468 = vmatprep.subr.bf16.mxu0 0
        %1469 = vmatpush1.bf16.xpose.msra.mxu0 0
        %1470 = vmatprep.subr.bf16.mxu0 0
        %1471 = vmatpush1.bf16.xpose.msra.mxu0 0
        %1472 = vmatprep.subr.bf16.mxu0 0
        %1473 = vmatpush1.bf16.xpose.msra.mxu0 0
        %1474 = vmatprep.subr.bf16.mxu0 0
        %1475 = vmatpush1.bf16.xpose.msra.mxu0 0
        %1476 = vmatprep.subr.bf16.mxu0 0
        %1477 = vmatpush1.bf16.xpose.msra.mxu0 0
        %1478 = vmatprep.subr.bf16.mxu0 0
        %1479 = vmatpush1.bf16.xpose.msra.mxu0 0
        %1480 = vmatprep.mubr.bf16.mxu0 0
        %1481 = vmatmul.mubr.bf16.gmra.mrb[0].mxu0 %v1443
        %v1482 = vpop.f32.mrb[0].mxu0
        %v1483 = vadd.f32 %v584, %v1482
        %v1484 = vpop.f32.mrb[0].mxu0
        %v1485 = vpop.f32.mrb[0].mxu0
        %v1486 = vpop.f32.mrb[0].mxu0
        %1487 = vdwg.mxu0
        %1488 = vrot.lane.b32.xlu0 %v576, 104
        %v1489 = vpop.permute.xlu0 %1488
        %1490 = vrot.lane.b32.xlu0 %v578, 72
        %v1491 = vpop.permute.xlu0 %1490
        %v1493 = vsel %vm594, %v1489, 0
        %v1496 = vsel %vm594, %v1491, 0
        %1498 = vmatprep.subr.bf16.mxu0 0
        %1499 = vmatpush1.bf16.xpose.msra.mxu0 %v1496
        %1500 = vmatprep.subr.bf16.mxu0 0
        %1501 = vmatpush1.bf16.xpose.msra.mxu0 0
        %1502 = vmatprep.subr.bf16.mxu0 0
        %1503 = vmatpush1.bf16.xpose.msra.mxu0 0
        %1504 = vmatprep.subr.bf16.mxu0 0
        %1505 = vmatpush1.bf16.xpose.msra.mxu0 0
        %1506 = vmatprep.subr.bf16.mxu0 0
        %1507 = vmatpush1.bf16.xpose.msra.mxu0 0
        %1508 = vmatprep.subr.bf16.mxu0 0
        %1509 = vmatpush1.bf16.xpose.msra.mxu0 0
        %1510 = vmatprep.subr.bf16.mxu0 0
        %1511 = vmatpush1.bf16.xpose.msra.mxu0 0
        %1512 = vmatprep.subr.bf16.mxu0 0
        %1513 = vmatpush1.bf16.xpose.msra.mxu0 0
        %1514 = vmatprep.subr.bf16.mxu0 0
        %1515 = vmatpush1.bf16.xpose.msra.mxu0 0
        %1516 = vmatprep.subr.bf16.mxu0 0
        %1517 = vmatpush1.bf16.xpose.msra.mxu0 0
        %1518 = vmatprep.subr.bf16.mxu0 0
        %1519 = vmatpush1.bf16.xpose.msra.mxu0 0
        %1520 = vmatprep.subr.bf16.mxu0 0
        %1521 = vmatpush1.bf16.xpose.msra.mxu0 0
        %1522 = vmatprep.subr.bf16.mxu0 0
        %1523 = vmatpush1.bf16.xpose.msra.mxu0 0
        %1524 = vmatprep.subr.bf16.mxu0 0
        %1525 = vmatpush1.bf16.xpose.msra.mxu0 0
        %1526 = vmatprep.subr.bf16.mxu0 0
        %1527 = vmatpush1.bf16.xpose.msra.mxu0 0
        %1528 = vmatprep.subr.bf16.mxu0 0
        %1529 = vmatpush1.bf16.xpose.msra.mxu0 0
        %1530 = vmatprep.mubr.bf16.mxu0 0
        %1531 = vmatmul.mubr.bf16.gmra.mrb[0].mxu0 %v1493
        %v1532 = vpop.f32.mrb[0].mxu0
        %v1533 = vadd.f32 %v588, %v1532
        %v1534 = vpop.f32.mrb[0].mxu0
        %v1535 = vpop.f32.mrb[0].mxu0
        %v1536 = vpop.f32.mrb[0].mxu0
        %1537 = vdwg.mxu0
        %v1538 = vsel %vm594, %v1483, -inf
        %1539 = vmax.xlane.f32.xlu0 %v1538
        %v1540 = vpop.xlane.xlu0 %1539
        %v1541 = vsel %vm594, %v1533, -inf
        %1542 = vmax.xlane.f32.xlu0 %v1541
        %v1543 = vpop.xlane.xlu0 %1542
        %v1544 = vsub.f32 -inf, %v1540
        %v1545 = vsub.f32 -inf, %v1543
        %v1546 = vmul.f32 %v1544, 1.442695
        %v1547 = vpow.pop %v1546
        %v1548 = vmul.f32 %v1545, 1.442695
        %v1549 = vpow.pop %v1548
        %v1550 = vsub.f32 %v1483, %v1540
        %v1551 = vsub.f32 %v1533, %v1543
        %v1552 = vmul.f32 %v1550, 1.442695
        %v1553 = vpow.pop %v1552
        %v1554 = vmul.f32 %v1551, 1.442695
        %v1555 = vpow.pop %v1554
        %v1556 = vmul.f32 %v1547, 0.0
        %v1557 = vmul.f32 %v1549, 0.0
        %v1558 = vsel %vm594, %v1553, 0.0
        %1559 = vadd.xlane.f32.xlu0 %v1558
        %v1560 = vpop.xlane.xlu0 %1559
        %v1561 = vsel %vm594, %v1555, 0.0
        %1562 = vadd.xlane.f32.xlu0 %v1561
        %v1563 = vpop.xlane.xlu0 %1562
        %v1564 = vadd.f32 %v1556, %v1560
        %v1565 = vadd.f32 %v1557, %v1563
        %v1566 = vpack.c.bf16 %v1553, %v1553
        %v1567 = vpack.c.bf16 %v1555, %v1555
        %1568 = vrot.lane.b32.xlu0 %v577, 40
        %v1569 = vpop.permute.xlu0 %1568
        %v1571 = vsel %vm594, %v1566, 0
        %v1574 = vsel %vm725, %v1569, 0
        %1576 = vmatprep.subr.bf16.mxu0 0
        %1577 = vmatpush1.bf16.msra.mxu0 %v1574
        %1578 = vmatprep.subr.bf16.mxu0 0
        %1579 = vmatpush1.bf16.msra.mxu0 0
        %1580 = vmatprep.subr.bf16.mxu0 0
        %1581 = vmatpush1.bf16.msra.mxu0 0
        %1582 = vmatprep.subr.bf16.mxu0 0
        %1583 = vmatpush1.bf16.msra.mxu0 0
        %1584 = vmatprep.subr.bf16.mxu0 0
        %1585 = vmatpush1.bf16.msra.mxu0 0
        %1586 = vmatprep.subr.bf16.mxu0 0
        %1587 = vmatpush1.bf16.msra.mxu0 0
        %1588 = vmatprep.subr.bf16.mxu0 0
        %1589 = vmatpush1.bf16.msra.mxu0 0
        %1590 = vmatprep.subr.bf16.mxu0 0
        %1591 = vmatpush1.bf16.msra.mxu0 0
        %1592 = vmatprep.subr.bf16.mxu0 0
        %1593 = vmatpush1.bf16.msra.mxu0 0
        %1594 = vmatprep.subr.bf16.mxu0 0
        %1595 = vmatpush1.bf16.msra.mxu0 0
        %1596 = vmatprep.subr.bf16.mxu0 0
        %1597 = vmatpush1.bf16.msra.mxu0 0
        %1598 = vmatprep.subr.bf16.mxu0 0
        %1599 = vmatpush1.bf16.msra.mxu0 0
        %1600 = vmatprep.subr.bf16.mxu0 0
        %1601 = vmatpush1.bf16.msra.mxu0 0
        %1602 = vmatprep.subr.bf16.mxu0 0
        %1603 = vmatpush1.bf16.msra.mxu0 0
        %1604 = vmatprep.subr.bf16.mxu0 0
        %1605 = vmatpush1.bf16.msra.mxu0 0
        %1606 = vmatprep.subr.bf16.mxu0 0
        %1607 = vmatpush1.bf16.msra.mxu0 0
        %1608 = vmatprep.mubr.bf16.mxu0 0
        %1609 = vmatmul.mubr.bf16.gmra.mrb[0].mxu0 %v1571
        %v1610 = vpop.f32.mrb[0].mxu0
        %v1611 = vadd.f32 0.0, %v1610
        %v1612 = vpop.f32.mrb[0].mxu0
        %v1613 = vpop.f32.mrb[0].mxu0
        %v1614 = vpop.f32.mrb[0].mxu0
        %1615 = vdwg.mxu0
        %1616 = vrot.lane.b32.xlu0 %v578, 40
        %v1617 = vpop.permute.xlu0 %1616
        %v1619 = vsel %vm594, %v1567, 0
        %v1622 = vsel %vm725, %v1617, 0
        %1624 = vmatprep.subr.bf16.mxu0 0
        %1625 = vmatpush1.bf16.msra.mxu0 %v1622
        %1626 = vmatprep.subr.bf16.mxu0 0
        %1627 = vmatpush1.bf16.msra.mxu0 0
        %1628 = vmatprep.subr.bf16.mxu0 0
        %1629 = vmatpush1.bf16.msra.mxu0 0
        %1630 = vmatprep.subr.bf16.mxu0 0
        %1631 = vmatpush1.bf16.msra.mxu0 0
        %1632 = vmatprep.subr.bf16.mxu0 0
        %1633 = vmatpush1.bf16.msra.mxu0 0
        %1634 = vmatprep.subr.bf16.mxu0 0
        %1635 = vmatpush1.bf16.msra.mxu0 0
        %1636 = vmatprep.subr.bf16.mxu0 0
        %1637 = vmatpush1.bf16.msra.mxu0 0
        %1638 = vmatprep.subr.bf16.mxu0 0
        %1639 = vmatpush1.bf16.msra.mxu0 0
        %1640 = vmatprep.subr.bf16.mxu0 0
        %1641 = vmatpush1.bf16.msra.mxu0 0
        %1642 = vmatprep.subr.bf16.mxu0 0
        %1643 = vmatpush1.bf16.msra.mxu0 0
        %1644 = vmatprep.subr.bf16.mxu0 0
        %1645 = vmatpush1.bf16.msra.mxu0 0
        %1646 = vmatprep.subr.bf16.mxu0 0
        %1647 = vmatpush1.bf16.msra.mxu0 0
        %1648 = vmatprep.subr.bf16.mxu0 0
        %1649 = vmatpush1.bf16.msra.mxu0 0
        %1650 = vmatprep.subr.bf16.mxu0 0
        %1651 = vmatpush1.bf16.msra.mxu0 0
        %1652 = vmatprep.subr.bf16.mxu0 0
        %1653 = vmatpush1.bf16.msra.mxu0 0
        %1654 = vmatprep.subr.bf16.mxu0 0
        %1655 = vmatpush1.bf16.msra.mxu0 0
        %1656 = vmatprep.mubr.bf16.mxu0 0
        %1657 = vmatmul.mubr.bf16.gmra.mrb[0].mxu0 %v1619
        %v1658 = vpop.f32.mrb[0].mxu0
        %v1659 = vadd.f32 0.0, %v1658
        %v1660 = vpop.f32.mrb[0].mxu0
        %v1661 = vpop.f32.mrb[0].mxu0
        %v1662 = vpop.f32.mrb[0].mxu0
        %1663 = vdwg.mxu0
        %v1664 = vadd.f32 %v1556, %v1611
        %v1665 = vadd.f32 %v1557, %v1659
        %v1666 = vrcp.pop %v1564
        %v1667 = vrcp.pop %v1565
        %v1668 = vmul.f32 %v1664, %v1666
        %v1669 = vmul.f32 %v1665, %v1667
        %v1670 = vpack.c.bf16 %v1669, %v1668
        %v1671 = vld [vmem:[%s464 + $0xc] sm:$0xf]
        %v1673 = vsel %vm594, %v1670, 0
        %v1676 = vsel %vm725, %v1671, 0
        %1678 = vmatprep.subr.bf16.mxu0 0
        %1679 = vmatpush1.bf16.msra.mxu0 %v1676
        %1680 = vmatprep.subr.bf16.mxu0 0
        %1681 = vmatpush1.bf16.msra.mxu0 0
        %1682 = vmatprep.subr.bf16.mxu0 0
        %1683 = vmatpush1.bf16.msra.mxu0 0
        %1684 = vmatprep.subr.bf16.mxu0 0
        %1685 = vmatpush1.bf16.msra.mxu0 0
        %1686 = vmatprep.subr.bf16.mxu0 0
        %1687 = vmatpush1.bf16.msra.mxu0 0
        %1688 = vmatprep.subr.bf16.mxu0 0
        %1689 = vmatpush1.bf16.msra.mxu0 0
        %1690 = vmatprep.subr.bf16.mxu0 0
        %1691 = vmatpush1.bf16.msra.mxu0 0
        %1692 = vmatprep.subr.bf16.mxu0 0
        %1693 = vmatpush1.bf16.msra.mxu0 0
        %1694 = vmatprep.subr.bf16.mxu0 0
        %1695 = vmatpush1.bf16.msra.mxu0 0
        %1696 = vmatprep.subr.bf16.mxu0 0
        %1697 = vmatpush1.bf16.msra.mxu0 0
        %1698 = vmatprep.subr.bf16.mxu0 0
        %1699 = vmatpush1.bf16.msra.mxu0 0
        %1700 = vmatprep.subr.bf16.mxu0 0
        %1701 = vmatpush1.bf16.msra.mxu0 0
        %1702 = vmatprep.subr.bf16.mxu0 0
        %1703 = vmatpush1.bf16.msra.mxu0 0
        %1704 = vmatprep.subr.bf16.mxu0 0
        %1705 = vmatpush1.bf16.msra.mxu0 0
        %1706 = vmatprep.subr.bf16.mxu0 0
        %1707 = vmatpush1.bf16.msra.mxu0 0
        %1708 = vmatprep.subr.bf16.mxu0 0
        %1709 = vmatpush1.bf16.msra.mxu0 0
        %1710 = vmatprep.mubr.bf16.mxu0 0
        %1711 = vmatmul.mubr.bf16.gmra.mrb[0].mxu0 %v1673
        %v1712 = vpop.f32.mrb[0].mxu0
        %v1713 = vadd.f32 0.0, %v1712
        %v1714 = vpop.f32.mrb[0].mxu0
        %v1715 = vpop.f32.mrb[0].mxu0
        %v1716 = vadd.f32 0.0, %v1715
        %v1717 = vpop.f32.mrb[0].mxu0
        %1718 = vdwg.mxu0
        %v1719 = vadd.f32 %v1436, %v1713
        %v1720 = vadd.f32 %v1437, %v1716
        %v1721 = vlaneseq
        %v1722 = vshrl.u32 %v1721, 7
        %v1723 = vsub.s32 0, %v1722
        %v1724 = vrot.slane %v503, %v1723
        %v1725 = vadd.f32 %v1719, %v1724
        %v1726 = vadd.f32 %v1720, %v1724
        %v1727 = vadd.f32 %v495, %v1725
        %v1728 = vadd.f32 %v496, %v1726
        %v1729 = vsel %vm528, %v1727, 0.0
        %1730 = vadd.xlane.f32.xlu0 %v1729
        %v1731 = vpop.xlane.xlu0 %1730
        %v1732 = vsel %vm528, %v1728, 0.0
        %1733 = vadd.xlane.f32.xlu0 %v1732
        %v1734 = vpop.xlane.xlu0 %1733
        %v1735 = vrcp.pop 32.0
        %v1736 = vmul.f32 %v1731, %v1735
        %v1737 = vmul.f32 %v1734, %v1735
        %v1738 = vsub.f32 %v1727, %v1736
        %v1739 = vsub.f32 %v1728, %v1737
        %v1740 = vmul.f32 %v1738, %v1738
        %v1741 = vmul.f32 %v1739, %v1739
        %v1742 = vsel %vm528, %v1740, 0.0
        %1743 = vadd.xlane.f32.xlu0 %v1742
        %v1744 = vpop.xlane.xlu0 %1743
        %v1745 = vsel %vm528, %v1741, 0.0
        %1746 = vadd.xlane.f32.xlu0 %v1745
        %v1747 = vpop.xlane.xlu0 %1746
        %v1748 = vmul.f32 %v1744, %v1735
        %v1749 = vmul.f32 %v1747, %v1735
        %v1750 = vadd.f32 %v1748, 1e-05
        %v1751 = vadd.f32 %v1749, 1e-05
        %v1752 = vrsqrt.pop %v1750
        %v1753 = vrsqrt.pop %v1751
        %v1754 = vmul.f32 %v1738, %v1752
        %v1755 = vmul.f32 %v1739, %v1753
        %v1756 = vlaneseq
        %v1757 = vshrl.u32 %v1756, 7
        %v1758 = vsub.s32 1, %v1757
        %v1759 = vrot.slane %v503, %v1758
        %v1760 = vmul.f32 %v1754, %v1759
        %v1761 = vmul.f32 %v1755, %v1759
        %v1762 = vlaneseq
        %v1763 = vshrl.u32 %v1762, 7
        %v1764 = vsub.s32 2, %v1763
        %v1765 = vrot.slane %v503, %v1764
        %v1766 = vadd.f32 %v1760, %v1765
        %v1767 = vadd.f32 %v1761, %v1765
        %v1768 = vpack.c.bf16 %v1767, %v1766
        %v1769 = vld [vmem:[%s469] sm:$0xf]
        %v1770 = vld [vmem:[%s469 + $0x4] sm:$0xf]
        %v1771 = vld [vmem:[%s469 + $0x8] sm:$0xf]
        %v1772 = vld [vmem:[%s469 + $0xc] sm:$0xf]
        %v1773 = vld [vmem:[%s472] sm:$0x1]
        %v1775 = vlaneseq
        %v1776 = vshrl.u32 %v1775, 7
        %v1777 = vsub.s32 0, %v1776
        %v1778 = vrot.slane %v1773, %v1777
        %v1784 = vunpack.c.l.b16 %v1769
        %v1785 = vunpack.c.l.b16 %v1770
        %v1786 = vunpack.c.l.b16 %v1771
        %v1787 = vunpack.c.l.b16 %v1772
        %v1788 = vpack.c.b16 %v1785, %v1784
        %v1789 = vpack.c.b16 %v1787, %v1786
        %v1793 = vsel %vm528, %v1768, 0
        %1795 = vmatprep.subr.bf16.mxu0 0
        %1796 = vmatpush1.bf16.msra.mxu0 %v1788
        %1797 = vmatprep.subr.bf16.mxu0 0
        %1798 = vmatpush1.bf16.msra.mxu0 %v1789
        %1799 = vmatprep.subr.bf16.mxu0 0
        %1800 = vmatpush1.bf16.msra.mxu0 0
        %1801 = vmatprep.subr.bf16.mxu0 0
        %1802 = vmatpush1.bf16.msra.mxu0 0
        %1803 = vmatprep.subr.bf16.mxu0 0
        %1804 = vmatpush1.bf16.msra.mxu0 0
        %1805 = vmatprep.subr.bf16.mxu0 0
        %1806 = vmatpush1.bf16.msra.mxu0 0
        %1807 = vmatprep.subr.bf16.mxu0 0
        %1808 = vmatpush1.bf16.msra.mxu0 0
        %1809 = vmatprep.subr.bf16.mxu0 0
        %1810 = vmatpush1.bf16.msra.mxu0 0
        %1811 = vmatprep.subr.bf16.mxu0 0
        %1812 = vmatpush1.bf16.msra.mxu0 0
        %1813 = vmatprep.subr.bf16.mxu0 0
        %1814 = vmatpush1.bf16.msra.mxu0 0
        %1815 = vmatprep.subr.bf16.mxu0 0
        %1816 = vmatpush1.bf16.msra.mxu0 0
        %1817 = vmatprep.subr.bf16.mxu0 0
        %1818 = vmatpush1.bf16.msra.mxu0 0
        %1819 = vmatprep.subr.bf16.mxu0 0
        %1820 = vmatpush1.bf16.msra.mxu0 0
        %1821 = vmatprep.subr.bf16.mxu0 0
        %1822 = vmatpush1.bf16.msra.mxu0 0
        %1823 = vmatprep.subr.bf16.mxu0 0
        %1824 = vmatpush1.bf16.msra.mxu0 0
        %1825 = vmatprep.subr.bf16.mxu0 0
        %1826 = vmatpush1.bf16.msra.mxu0 0
        %1827 = vmatprep.mubr.bf16.mxu0 0
        %1828 = vmatmul.mubr.bf16.gmra.mrb[0].mxu0 %v1793
        %v1829 = vpop.f32.mrb[0].mxu0
        %v1830 = vadd.f32 %v1778, %v1829
        %v1831 = vpop.f32.mrb[0].mxu0
        %v1832 = vpop.f32.mrb[0].mxu0
        %v1833 = vadd.f32 %v1778, %v1832
        %v1834 = vpop.f32.mrb[0].mxu0
        %1835 = vdwg.mxu0
        %v1836 = vmax.f32 %v1830, 0.0
        %v1837 = vmax.f32 %v1833, 0.0
        %v1838 = vpack.c.bf16 %v1837, %v1836
        %v1839 = vld [vmem:[%s477] sm:$0xf]
        %v1840 = vld [vmem:[%s477 + $0x4] sm:$0xf]
        %v1841 = vld [vmem:[%s477 + $0x8] sm:$0xf]
        %v1842 = vld [vmem:[%s477 + $0xc] sm:$0xf]
        %v1843 = vld [vmem:[%s477 + $0x10] sm:$0xf]
        %v1844 = vld [vmem:[%s477 + $0x14] sm:$0xf]
        %v1845 = vld [vmem:[%s477 + $0x18] sm:$0xf]
        %v1846 = vld [vmem:[%s477 + $0x1c] sm:$0xf]
        %v1847 = vlaneseq
        %v1848 = vshrl.u32 %v1847, 7
        %v1849 = vsub.s32 3, %v1848
        %v1850 = vrot.slane %v503, %v1849
        %v1859 = vunpack.c.l.b16 %v1839
        %v1860 = vunpack.c.l.b16 %v1840
        %v1861 = vunpack.c.l.b16 %v1841
        %v1862 = vunpack.c.l.b16 %v1842
        %v1863 = vunpack.c.l.b16 %v1843
        %v1864 = vunpack.c.l.b16 %v1844
        %v1865 = vunpack.c.l.b16 %v1845
        %v1866 = vunpack.c.l.b16 %v1846
        %v1867 = vpack.c.b16 %v1860, %v1859
        %v1868 = vpack.c.b16 %v1862, %v1861
        %v1869 = vpack.c.b16 %v1864, %v1863
        %v1870 = vpack.c.b16 %v1866, %v1865
        %vm1875 = vcmask 523264
        %v1877 = vsel %vm1875, %v1838, 0
        %1879 = vmatprep.subr.bf16.mxu0 0
        %1880 = vmatpush1.bf16.msra.mxu0 %v1867
        %1881 = vmatprep.subr.bf16.mxu0 0
        %1882 = vmatpush1.bf16.msra.mxu0 %v1868
        %1883 = vmatprep.subr.bf16.mxu0 0
        %1884 = vmatpush1.bf16.msra.mxu0 %v1869
        %1885 = vmatprep.subr.bf16.mxu0 0
        %1886 = vmatpush1.bf16.msra.mxu0 %v1870
        %1887 = vmatprep.subr.bf16.mxu0 0
        %1888 = vmatpush1.bf16.msra.mxu0 0
        %1889 = vmatprep.subr.bf16.mxu0 0
        %1890 = vmatpush1.bf16.msra.mxu0 0
        %1891 = vmatprep.subr.bf16.mxu0 0
        %1892 = vmatpush1.bf16.msra.mxu0 0
        %1893 = vmatprep.subr.bf16.mxu0 0
        %1894 = vmatpush1.bf16.msra.mxu0 0
        %1895 = vmatprep.subr.bf16.mxu0 0
        %1896 = vmatpush1.bf16.msra.mxu0 0
        %1897 = vmatprep.subr.bf16.mxu0 0
        %1898 = vmatpush1.bf16.msra.mxu0 0
        %1899 = vmatprep.subr.bf16.mxu0 0
        %1900 = vmatpush1.bf16.msra.mxu0 0
        %1901 = vmatprep.subr.bf16.mxu0 0
        %1902 = vmatpush1.bf16.msra.mxu0 0
        %1903 = vmatprep.subr.bf16.mxu0 0
        %1904 = vmatpush1.bf16.msra.mxu0 0
        %1905 = vmatprep.subr.bf16.mxu0 0
        %1906 = vmatpush1.bf16.msra.mxu0 0
        %1907 = vmatprep.subr.bf16.mxu0 0
        %1908 = vmatpush1.bf16.msra.mxu0 0
        %1909 = vmatprep.subr.bf16.mxu0 0
        %1910 = vmatpush1.bf16.msra.mxu0 0
        %1911 = vmatprep.mubr.bf16.mxu0 0
        %1912 = vmatmul.mubr.bf16.gmra.mrb[0].mxu0 %v1877
        %v1913 = vpop.f32.mrb[0].mxu0
        %v1914 = vadd.f32 %v1850, %v1913
        %v1915 = vpop.f32.mrb[0].mxu0
        %v1916 = vpop.f32.mrb[0].mxu0
        %v1917 = vadd.f32 %v1850, %v1916
        %v1918 = vpop.f32.mrb[0].mxu0
        %1919 = vdwg.mxu0
        %v1920 = vadd.f32 %v1766, %v1914
        %v1921 = vadd.f32 %v1767, %v1917
        %v1922 = vsel %vm528, %v1920, 0.0
        %1923 = vadd.xlane.f32.xlu0 %v1922
        %v1924 = vpop.xlane.xlu0 %1923
        %v1925 = vsel %vm528, %v1921, 0.0
        %1926 = vadd.xlane.f32.xlu0 %v1925
        %v1927 = vpop.xlane.xlu0 %1926
        %v1928 = vmul.f32 %v1924, %v1735
        %v1929 = vmul.f32 %v1927, %v1735
        %v1930 = vsub.f32 %v1920, %v1928
        %v1931 = vsub.f32 %v1921, %v1929
        %v1932 = vmul.f32 %v1930, %v1930
        %v1933 = vmul.f32 %v1931, %v1931
        %v1934 = vsel %vm528, %v1932, 0.0
        %1935 = vadd.xlane.f32.xlu0 %v1934
        %v1936 = vpop.xlane.xlu0 %1935
        %v1937 = vsel %vm528, %v1933, 0.0
        %1938 = vadd.xlane.f32.xlu0 %v1937
        %v1939 = vpop.xlane.xlu0 %1938
        %v1940 = vmul.f32 %v1936, %v1735
        %v1941 = vmul.f32 %v1939, %v1735
        %v1942 = vadd.f32 %v1940, 1e-05
        %v1943 = vadd.f32 %v1941, 1e-05
        %v1944 = vrsqrt.pop %v1942
        %v1945 = vrsqrt.pop %v1943
        %v1946 = vmul.f32 %v1930, %v1944
        %v1947 = vmul.f32 %v1931, %v1945
        %v1948 = vlaneseq
        %v1949 = vshrl.u32 %v1948, 7
        %v1950 = vsub.s32 4, %v1949
        %v1951 = vrot.slane %v503, %v1950
        %v1952 = vmul.f32 %v1946, %v1951
        %v1953 = vmul.f32 %v1947, %v1951
        %v1954 = vlaneseq
        %v1955 = vshrl.u32 %v1954, 7
        %v1956 = vsub.s32 5, %v1955
        %v1957 = vrot.slane %v503, %v1956
        %v1958 = vadd.f32 %v1952, %v1957
        %v1959 = vadd.f32 %v1953, %v1957
        %1960 = vst.msk [vmem:[#allocation2] sm:$0xff] %vm528, %v1958
        %1961 = vst.msk [vmem:[#allocation2 + $0x8] sm:$0xff] %vm528, %v1959
        %p1962 = scmp.eq.s32.totalorder %s26, 1
        // Predicated region
        $region61: #{tpu_custom_call.1} parent=55 // pred_check
          %p1963 = pneg %p1962
        $region62: #{tpu_custom_call.1} parent=55 // pred_check_branch
          %1965 = sbr.rel (%p1963) target = $region64
        $region63: #{tpu_custom_call.1} parent=55 // pred_region
          %1966 = vst.msk [vmem:[#allocation3] sm:$0xff] %vm528, %v1958
          %1967 = vst.msk [vmem:[#allocation3 + $0x8] sm:$0xff] %vm528, %v1959
        $region64: #{tpu_custom_call.1} parent=55 // pred_fallthru
          _
        // Predicated region
        $region65: #{tpu_custom_call.1} parent=55 // pred_check
          %p1968 = pneg %p285
        $region66: #{tpu_custom_call.1} parent=55 // pred_check_branch
          %1970 = sbr.rel (%p1968) target = $region68
        $region67: #{tpu_custom_call.1} parent=55 // pred_region
          %s1971 = smul.u32 2, %s25
          %s1973 = ssub.s32 256, 256
          %1974 = vsyncadd [#allocation4], %s1973
          %s1975 = smul.addr %s1971, 128
          %s1976 = scalar_lea.hbm %s9, %s1975
          %s1977 = sshll.u32 [#allocation3], 4
          %s1978 = int_to_ptr.vmem [resolvable:$true] %s1977
          %1983 = dma.vmem_to_hbm [thread:$0]  %s1978, 256, %s1976, [#allocation4], 128, 128, 8
        $region68: #{tpu_custom_call.1} parent=55 // pred_fallthru
          _
        // Predicated region
        $region69: #{tpu_custom_call.1} parent=55 // pred_check
          %p1984 = pneg %p285
        $region70: #{tpu_custom_call.1} parent=55 // pred_check_branch
          %1986 = sbr.rel (%p1984) target = $region72
        $region71: #{tpu_custom_call.1} parent=55 // pred_region
          %1987 = dma.done [#allocation4], 256
        $region72: #{tpu_custom_call.1} parent=55 // pred_fallthru
          _
      $region56: #{tpu_custom_call.1} parent=5 // pred_fallthru
        _
      %p1988 = scmp.le.s32.totalorder 2, %s16
      // Predicated region
      $region73: #{tpu_custom_call.1} parent=5 // pred_check
        %p1989 = pneg %p1988
      $region74: #{tpu_custom_call.1} parent=5 // pred_check_branch
        %1991 = sbr.rel (%p1989) target = $region76
      $region75: #{tpu_custom_call.1} parent=5 // pred_region
        %s1992 = ssub.s32 %s16, 2
      $region76: #{tpu_custom_call.1} parent=5 // pred_fallthru
        _
    $region6: #{tpu_custom_call.1} parent=1 // loop_footer
      %s20 = sadd.s32 1, %s16
    $region7: #{tpu_custom_call.1} parent=1 // loop_footer_branch
      %15 = sbr.rel target = $region3
    $region8: #{tpu_custom_call.1} parent=1 // loop_exit
      _
    %1993 = vsyncpa [#allocation4], 1
    %s1994 = scalar_lea.sflag [#allocation4], 1
    %1995 = vsyncpa %s1994, 1

</llo_original>
